<compile_context>
chip_gen: v7x
topology: tpu7x:2x2x1
jax: 0.10.0
libtpu: 0.0.40
codegen_flags: <defaults>
</compile_context>

<pallas_src>
import numpy as np
import jax
import jax.numpy as jnp
from jax.experimental import pallas as pl
from jax.experimental.pallas import tpu as pltpu

LRELU_SLOPE = 0.2
BN_EPS = 1e-5
Y_DIM = 13
C0_OUT = 14      # conv0 out channels
C1_OUT = 77      # conv1 out channels
KH0, KH1 = 2, 4  # conv kernel heights
DFC = 1024       # dfc_dim
YT = 16          # width of the packed y-tail  [y(13), 1, 0, 0]


def _lrelu(z):
    # slope in (0,1) -> max(z, slope*z) == leaky_relu(z, slope)
    return jnp.maximum(z, LRELU_SLOPE * z)


# ----------------------------- parameter prep ------------------------------

def init_params(key, pitch_range):
    ks = jax.random.split(key, 8)
    s = 0.05
    return dict(
        w0=s * jax.random.normal(ks[0], (C0_OUT, 14, KH0, pitch_range), jnp.float32),
        b0=s * jax.random.normal(ks[1], (C0_OUT,), jnp.float32),
        w1=s * jax.random.normal(ks[2], (C1_OUT, 27, KH1, 1), jnp.float32),
        b1=s * jax.random.normal(ks[3], (C1_OUT,), jnp.float32),
        wl1=s * jax.random.normal(ks[4], (DFC, 244), jnp.float32),
        bl1=s * jax.random.normal(ks[5], (DFC,), jnp.float32),
        wl2=s * jax.random.normal(ks[6], (1, DFC + Y_DIM), jnp.float32),
        bl2=s * jax.random.normal(ks[7], (1,), jnp.float32),
    )


def prepare_params(params, B, H, W):
    """Build the banded / packed weight slabs once, off the hot path.

    Every conv_cond_concat, im2col gather and bias is folded into the weight
    matrices, so the kernel is 3 matmuls + VPU/EUP math, no selection inputs.
    """
    H0 = (H - KH0) // 2 + 1
    H1 = (H0 - KH1) // 2 + 1
    assert C1_OUT * H1 + Y_DIM == params["wl1"].shape[1]

    w0 = np.asarray(params["w0"]); b0 = np.asarray(params["b0"])
    w1 = np.asarray(params["w1"])[:, :, :, 0]; b1 = np.asarray(params["b1"])
    wl1 = np.asarray(params["wl1"]); bl1 = np.asarray(params["bl1"])
    wl2 = np.asarray(params["wl2"]); bl2 = np.asarray(params["bl2"])

    KXY = H * W + YT            # 272 : [x_flat | y | 1 | 0 0]
    NC0 = H0 * C0_OUT           # 112 : conv0 output columns (i*14 + c)
    K1 = NC0 + YT               # 128 : [h0_flat | y | 1 | 0 0]
    N1 = H1 * C1_OUT            # 231 : conv1 output columns (j*77 + o)
    K2 = N1 + YT                # 247 : [h1_flat | y | 1 | 0 0]

    # conv0 as one banded matmul.  The y channels of conv_cond_concat are
    # spatially constant, so their taps collapse into a summed row per output.
    w0big = np.zeros((KXY, NC0), np.float32)
    w0y = w0[:, 1:, :, :].sum(axis=(2, 3)).T                  # (13, 14)
    for i in range(H0):
        for kh in range(KH0):
            w0big[(2 * i + kh) * W:(2 * i + kh + 1) * W,
                  i * C0_OUT:(i + 1) * C0_OUT] = w0[:, 0, kh, :].T
        w0big[H * W:H * W + Y_DIM, i * C0_OUT:(i + 1) * C0_OUT] = w0y
        w0big[H * W + Y_DIM, i * C0_OUT:(i + 1) * C0_OUT] = b0

    # conv1 (kw=1) as one banded matmul over [h0_flat | y | 1].
    w1big = np.zeros((K1, N1), np.float32)
    w1y = w1[:, C0_OUT:, :].sum(axis=2).T                     # (13, 77)
    for j in range(H1):
        for kh in range(KH1):
            w1big[(2 * j + kh) * C0_OUT:(2 * j + kh + 1) * C0_OUT,
                  j * C1_OUT:(j + 1) * C1_OUT] = w1[:, :C0_OUT, kh].T
        w1big[NC0:NC0 + Y_DIM, j * C1_OUT:(j + 1) * C1_OUT] = w1y
        w1big[NC0 + Y_DIM, j * C1_OUT:(j + 1) * C1_OUT] = b1

    # linear1: rows permuted to the kernel's (j*77 + o) h1 layout, y rows and
    # bias row appended; last 2 rows stay zero (match the zero-padded y-tail).
    wl1big = np.zeros((K2, DFC), np.float32)
    wl1big[:N1] = (wl1[:, :N1].reshape(DFC, C1_OUT, H1)
                   .transpose(2, 1, 0).reshape(N1, DFC))
    wl1big[N1:N1 + Y_DIM] = wl1[:, N1:].T
    wl1big[N1 + Y_DIM] = bl1

    # linear2: single packed row  [w_h2(1024) | w_y(13) | bias | 0 | 0].
    w2all = np.zeros((1, DFC + YT), np.float32)
    w2all[0, :DFC] = wl2[0, :DFC]
    w2all[0, DFC:DFC + Y_DIM] = wl2[0, DFC:]
    w2all[0, DFC + Y_DIM] = bl2[0]

    return dict(w0big=jnp.asarray(w0big), w1big=jnp.asarray(w1big),
                wl1big=jnp.asarray(wl1big), w2all=jnp.asarray(w2all))


# ------------------------------ fused kernel -------------------------------

def make_discriminator_forward(B, H, W):
    H0 = (H - KH0) // 2 + 1
    H1 = (H0 - KH1) // 2 + 1
    NC0 = H0 * C0_OUT           # 112
    N1 = H1 * C1_OUT            # 231
    K1 = NC0 + YT               # 128
    K2 = N1 + YT                # 247
    KXY = H * W + YT            # 272

    def fused_kernel(xy_ref, w0_ref, w1_ref, wl1_ref, w2_ref, out_ref,
                     act1_ref, act3_ref):
        f32 = jnp.float32
        ytail = xy_ref[:, H * W:H * W + YT]                       # (B,16)=[y,1,0,0]

        # ---- conv0 (+cond concat, bias folded) + lrelu : one banded matmul --
        h0 = _lrelu(jnp.dot(xy_ref[...], w0_ref[...],
                            preferred_element_type=f32))          # (B, 112)
        out_ref[:, 0:NC0] = h0                                    # fm rows
        act1_ref[:, 0:NC0] = h0
        act1_ref[:, NC0:K1] = ytail                               # K fully covered

        # ---- conv1 (+cond concat, bias folded) + batch_norm_2d + lrelu ------
        h1 = jnp.dot(act1_ref[...], w1_ref[...],
                     preferred_element_type=f32)                  # (B, 231)
        act3_ref[:, 0:N1] = h1
        act3_ref[:, N1:K2] = ytail                                # K fully covered
        # per-channel stats over (B, H1) = 6 values; columns are j*77 + o
        s = [act3_ref[:, j * C1_OUT:(j + 1) * C1_OUT] for j in range(H1)]
        cnt = float(B * H1)
        mu = sum(jnp.sum(sj, axis=0, keepdims=True) for sj in s) / cnt
        var = sum(jnp.sum((sj - mu) ** 2, axis=0, keepdims=True) for sj in s) / cnt
        inv = jax.lax.rsqrt(var + BN_EPS)
        for j in range(H1):
            act3_ref[:, j * C1_OUT:(j + 1) * C1_OUT] = _lrelu((s[j] - mu) * inv)

        # ---- linear1 (+cond concat, bias folded) + batch_norm_1d + lrelu ----
        h2 = jnp.dot(act3_ref[...], wl1_ref[...],
                     preferred_element_type=f32)                  # (B, 1024)
        mu2 = jnp.mean(h2, axis=0, keepdims=True)
        var2 = jnp.mean((h2 - mu2) ** 2, axis=0, keepdims=True)
        h2 = _lrelu((h2 - mu2) * jax.lax.rsqrt(var2 + BN_EPS))

        # ---- linear2 (+cond concat, bias folded) + sigmoid : VPU reduction --
        h3 = (jnp.sum(h2 * w2_ref[:, 0:DFC], axis=1, keepdims=True)
              + jnp.sum(ytail * w2_ref[:, DFC:DFC + YT], axis=1, keepdims=True))
        out_ref[:, NC0:NC0 + YT] = jnp.zeros((B, YT), f32)        # deterministic pad
        out_ref[:, NC0:NC0 + 1] = h3
        out_ref[:, NC0 + 1:NC0 + 2] = jax.nn.sigmoid(h3)

    vmem = pl.BlockSpec(memory_space=pltpu.MemorySpace.VMEM)
    flops = int(2 * B * (KXY * NC0 + K1 * N1 + K2 * DFC) + 4 * B * (DFC + YT))
    bytes_accessed = int(4 * (B * KXY + KXY * NC0 + K1 * N1 + K2 * DFC
                              + (DFC + YT) + B * 128))
    fused = pl.pallas_call(
        fused_kernel,
        out_shape=jax.ShapeDtypeStruct((B, 128), jnp.float32),
        in_specs=[vmem] * 5,
        out_specs=vmem,
        scratch_shapes=[pltpu.VMEM((B, K1), jnp.float32),
                        pltpu.VMEM((B, K2), jnp.float32)],
        cost_estimate=pl.CostEstimate(flops=flops,
                                      transcendentals=int(C1_OUT + DFC + B),
                                      bytes_accessed=bytes_accessed),
    )
    # NOTE(v7x): at B=2 a gridless call is right; for many sample-pairs per
    # step, add a "parallel" grid over pairs with constant weight index_maps so
    # both TensorCores are used and the ~1.2 MB of weights stays VMEM-resident.

    def forward(prep, x, y):
        # conv0 windows are non-overlapping (kh == stride == 2) and kw == W, so
        # the im2col slab is a PURE reshape of x; y, the constant-1 bias column
        # and 2 zero pad columns are appended once here (tiny XLA concat).
        xy = jnp.concatenate(
            [x.reshape(B, H * W), y, jnp.ones((B, 1), x.dtype),
             jnp.zeros((B, 2), x.dtype)], axis=1)                 # (B, 272)
        out = fused(xy, prep["w0big"], prep["w1big"], prep["wl1big"],
                    prep["w2all"])
        fm = out[:, :NC0].reshape(B, H0, C0_OUT).transpose(0, 2, 1)[..., None]
        h3 = out[:, NC0:NC0 + 1]
        sig = out[:, NC0 + 1:NC0 + 2]
        return sig, h3, fm

    return forward


# ----------------------- pure-JAX reference (check) ------------------------

def reference_forward(params, x, y, B):
    hp = jax.lax.Precision.HIGHEST
    H, W = x.shape[2], x.shape[3]
    yb = y.reshape(B, Y_DIM, 1, 1)
    xc = jnp.concatenate([x, jnp.broadcast_to(yb, (B, Y_DIM, H, W))], axis=1)
    h0 = jax.lax.conv_general_dilated(
        xc, params["w0"], (2, 2), "VALID",
        dimension_numbers=("NCHW", "OIHW", "NCHW"), precision=hp
    ) + params["b0"][None, :, None, None]
    h0 = _lrelu(h0)
    fm = h0
    h0c = jnp.concatenate([h0, jnp.broadcast_to(yb, (B, Y_DIM, h0.shape[2], 1))], axis=1)
    h1 = jax.lax.conv_general_dilated(
        h0c, params["w1"], (2, 2), "VALID",
        dimension_numbers=("NCHW", "OIHW", "NCHW"), precision=hp
    ) + params["b1"][None, :, None, None]
    mean = jnp.mean(h1, axis=(0, 2, 3), keepdims=True)
    var = jnp.mean((h1 - mean) ** 2, axis=(0, 2, 3), keepdims=True)
    h1 = _lrelu((h1 - mean) * jax.lax.rsqrt(var + BN_EPS))
    h1 = h1.reshape(B, -1)
    h1 = jnp.concatenate([h1, y], axis=1)
    h2 = jnp.dot(h1, params["wl1"].T, precision=hp) + params["bl1"]
    mean = jnp.mean(h2, axis=0, keepdims=True)
    var = jnp.mean((h2 - mean) ** 2, axis=0, keepdims=True)
    h2 = _lrelu((h2 - mean) * jax.lax.rsqrt(var + BN_EPS))
    h2 = jnp.concatenate([h2, y], axis=1)
    h3 = jnp.dot(h2, params["wl2"].T, precision=hp) + params["bl2"]
    return jax.nn.sigmoid(h3), h3, fm


if __name__ == "__main__":
    # linear1 has in_features=244 -> 77*H1 + 13 = 244 -> H1=3 -> H0=8 -> H=16.
    B, pitch_range, H = 2, 16, 16
    key = jax.random.PRNGKey(0)
    kx, ky, kp = jax.random.split(key, 3)
    x = jax.random.normal(kx, (B, 1, H, pitch_range), jnp.float32)
    y = jax.random.normal(ky, (B, Y_DIM), jnp.float32)
    params = init_params(kp, pitch_range)

    prep = prepare_params(params, B, H, pitch_range)          # once, off the hot path
    fwd = jax.jit(make_discriminator_forward(B, H, pitch_range))
    h3_sig, h3, fm = fwd(prep, x, y)
    jax.block_until_ready((h3_sig, h3, fm))

    ref_sig, ref_h3, ref_fm = reference_forward(params, x, y, B)
    assert h3_sig.shape == (B, 1) and h3.shape == (B, 1) and fm.shape == (B, C0_OUT, 8, 1)
    assert np.allclose(np.asarray(h3_sig), np.asarray(ref_sig), atol=1e-2, rtol=1e-2)
    assert np.allclose(np.asarray(h3), np.asarray(ref_h3), atol=1e-2, rtol=1e-2)
    assert np.allclose(np.asarray(fm), np.asarray(ref_fm), atol=1e-2, rtol=1e-2)
    print("KERNEL_OK")
</pallas_src>

<mosaic_0001>
module attributes {stable_mosaic.version = 11 : i64} {
  func.func @fused_kernel(%arg0: memref<2x272xf32, #tpu.memory_space<vmem>>, %arg1: memref<272x112xf32, #tpu.memory_space<vmem>>, %arg2: memref<128x231xf32, #tpu.memory_space<vmem>>, %arg3: memref<247x1024xf32, #tpu.memory_space<vmem>>, %arg4: memref<1x1040xf32, #tpu.memory_space<vmem>>, %arg5: memref<2x128xf32, #tpu.memory_space<vmem>>, %arg6: memref<2x128xf32, #tpu.memory_space<vmem>>, %arg7: memref<2x247xf32, #tpu.memory_space<vmem>>) attributes {dimension_semantics = [], scalar_prefetch = 0 : i64, scratch_operands = 2 : i64, tpu.core_type = #tpu.core_type<tc>} {
    %c0 = arith.constant 0 : index
    %c256 = arith.constant 256 : index
    %0 = vector.load %arg0[%c0, %c256] : memref<2x272xf32, #tpu.memory_space<vmem>>, vector<2x16xf32>
    %c0_0 = arith.constant 0 : index
    %c0_1 = arith.constant 0 : index
    %1 = vector.load %arg0[%c0_0, %c0_1] : memref<2x272xf32, #tpu.memory_space<vmem>>, vector<2x272xf32>
    %c0_2 = arith.constant 0 : index
    %c0_3 = arith.constant 0 : index
    %2 = vector.load %arg1[%c0_2, %c0_3] : memref<272x112xf32, #tpu.memory_space<vmem>>, vector<272x112xf32>
    %cst = arith.constant dense<0.000000e+00> : vector<2x112xf32>
    %3 = tpu.matmul %1, %2, %cst {dimension_numbers = #tpu.dot_dimension_numbers<[1], [0], [0], [1], [0, 0, 1, 1], [], []>} : vector<2x272xf32>, vector<272x112xf32>, vector<2x112xf32> -> vector<2x112xf32>
    %cst_4 = arith.constant 2.000000e-01 : f32
    %4 = vector.broadcast %cst_4 : f32 to vector<2x112xf32>
    %5 = arith.mulf %4, %3 : vector<2x112xf32>
    %6 = arith.maximumf %3, %5 : vector<2x112xf32>
    %c0_5 = arith.constant 0 : index
    %c0_6 = arith.constant 0 : index
    %7 = vector.load %arg5[%c0_5, %c0_6] : memref<2x128xf32, #tpu.memory_space<vmem>>, vector<2x112xf32>
    tpu.vector_store %arg5[%c0_5, %c0_6], %6 {strides = array<i32>} : memref<2x128xf32, #tpu.memory_space<vmem>>, vector<2x112xf32>,
    %c0_7 = arith.constant 0 : index
    %c0_8 = arith.constant 0 : index
    %8 = vector.load %arg6[%c0_7, %c0_8] : memref<2x128xf32, #tpu.memory_space<vmem>>, vector<2x112xf32>
    tpu.vector_store %arg6[%c0_7, %c0_8], %6 {strides = array<i32>} : memref<2x128xf32, #tpu.memory_space<vmem>>, vector<2x112xf32>,
    %c0_9 = arith.constant 0 : index
    %c112 = arith.constant 112 : index
    %9 = vector.load %arg6[%c0_9, %c112] : memref<2x128xf32, #tpu.memory_space<vmem>>, vector<2x16xf32>
    tpu.vector_store %arg6[%c0_9, %c112], %0 {strides = array<i32>} : memref<2x128xf32, #tpu.memory_space<vmem>>, vector<2x16xf32>,
    %c0_10 = arith.constant 0 : index
    %c0_11 = arith.constant 0 : index
    %10 = vector.load %arg6[%c0_10, %c0_11] : memref<2x128xf32, #tpu.memory_space<vmem>>, vector<2x128xf32>
    %c0_12 = arith.constant 0 : index
    %c0_13 = arith.constant 0 : index
    %11 = vector.load %arg2[%c0_12, %c0_13] : memref<128x231xf32, #tpu.memory_space<vmem>>, vector<128x231xf32>
    %cst_14 = arith.constant dense<0.000000e+00> : vector<2x231xf32>
    %12 = tpu.matmul %10, %11, %cst_14 {dimension_numbers = #tpu.dot_dimension_numbers<[1], [0], [0], [1], [0, 0, 1, 1], [], []>} : vector<2x128xf32>, vector<128x231xf32>, vector<2x231xf32> -> vector<2x231xf32>
    %c0_15 = arith.constant 0 : index
    %c0_16 = arith.constant 0 : index
    %13 = vector.load %arg7[%c0_15, %c0_16] : memref<2x247xf32, #tpu.memory_space<vmem>>, vector<2x231xf32>
    tpu.vector_store %arg7[%c0_15, %c0_16], %12 {strides = array<i32>} : memref<2x247xf32, #tpu.memory_space<vmem>>, vector<2x231xf32>,
    %c0_17 = arith.constant 0 : index
    %c231 = arith.constant 231 : index
    %14 = vector.load %arg7[%c0_17, %c231] : memref<2x247xf32, #tpu.memory_space<vmem>>, vector<2x16xf32>
    tpu.vector_store %arg7[%c0_17, %c231], %0 {strides = array<i32>} : memref<2x247xf32, #tpu.memory_space<vmem>>, vector<2x16xf32>,
    %c0_18 = arith.constant 0 : index
    %c0_19 = arith.constant 0 : index
    %15 = vector.load %arg7[%c0_18, %c0_19] : memref<2x247xf32, #tpu.memory_space<vmem>>, vector<2x77xf32>
    %c0_20 = arith.constant 0 : index
    %c77 = arith.constant 77 : index
    %16 = vector.load %arg7[%c0_20, %c77] : memref<2x247xf32, #tpu.memory_space<vmem>>, vector<2x77xf32>
    %c0_21 = arith.constant 0 : index
    %c154 = arith.constant 154 : index
    %17 = vector.load %arg7[%c0_21, %c154] : memref<2x247xf32, #tpu.memory_space<vmem>>, vector<2x77xf32>
    %cst_22 = arith.constant dense<0.000000e+00> : vector<77xf32>
    %18 = vector.multi_reduction <add>, %15, %cst_22 [0] : vector<2x77xf32> to vector<77xf32>
    %19 = vector.shape_cast %18 : vector<77xf32> to vector<1x77xf32>
    %cst_23 = arith.constant 0.000000e+00 : f32
    %20 = vector.broadcast %cst_23 : f32 to vector<1x77xf32>
    %21 = arith.addf %20, %19 : vector<1x77xf32>
    %cst_24 = arith.constant dense<0.000000e+00> : vector<77xf32>
    %22 = vector.multi_reduction <add>, %16, %cst_24 [0] : vector<2x77xf32> to vector<77xf32>
    %23 = vector.shape_cast %22 : vector<77xf32> to vector<1x77xf32>
    %24 = arith.addf %21, %23 : vector<1x77xf32>
    %cst_25 = arith.constant dense<0.000000e+00> : vector<77xf32>
    %25 = vector.multi_reduction <add>, %17, %cst_25 [0] : vector<2x77xf32> to vector<77xf32>
    %26 = vector.shape_cast %25 : vector<77xf32> to vector<1x77xf32>
    %27 = arith.addf %24, %26 : vector<1x77xf32>
    %cst_26 = arith.constant 6.000000e+00 : f32
    %28 = vector.broadcast %cst_26 : f32 to vector<1x77xf32>
    %29 = arith.divf %27, %28 : vector<1x77xf32>
    %30 = vector.broadcast %29 : vector<1x77xf32> to vector<2x77xf32>
    %31 = arith.subf %15, %30 : vector<2x77xf32>
    %32 = arith.mulf %31, %31 : vector<2x77xf32>
    %cst_27 = arith.constant dense<0.000000e+00> : vector<77xf32>
    %33 = vector.multi_reduction <add>, %32, %cst_27 [0] : vector<2x77xf32> to vector<77xf32>
    %34 = vector.shape_cast %33 : vector<77xf32> to vector<1x77xf32>
    %cst_28 = arith.constant 0.000000e+00 : f32
    %35 = vector.broadcast %cst_28 : f32 to vector<1x77xf32>
    %36 = arith.addf %35, %34 : vector<1x77xf32>
    %37 = vector.broadcast %29 : vector<1x77xf32> to vector<2x77xf32>
    %38 = arith.subf %16, %37 : vector<2x77xf32>
    %39 = arith.mulf %38, %38 : vector<2x77xf32>
    %cst_29 = arith.constant dense<0.000000e+00> : vector<77xf32>
    %40 = vector.multi_reduction <add>, %39, %cst_29 [0] : vector<2x77xf32> to vector<77xf32>
    %41 = vector.shape_cast %40 : vector<77xf32> to vector<1x77xf32>
    %42 = arith.addf %36, %41 : vector<1x77xf32>
    %43 = vector.broadcast %29 : vector<1x77xf32> to vector<2x77xf32>
    %44 = arith.subf %17, %43 : vector<2x77xf32>
    %45 = arith.mulf %44, %44 : vector<2x77xf32>
    %cst_30 = arith.constant dense<0.000000e+00> : vector<77xf32>
    %46 = vector.multi_reduction <add>, %45, %cst_30 [0] : vector<2x77xf32> to vector<77xf32>
    %47 = vector.shape_cast %46 : vector<77xf32> to vector<1x77xf32>
    %48 = arith.addf %42, %47 : vector<1x77xf32>
    %cst_31 = arith.constant 6.000000e+00 : f32
    %49 = vector.broadcast %cst_31 : f32 to vector<1x77xf32>
    %50 = arith.divf %48, %49 : vector<1x77xf32>
    %cst_32 = arith.constant 9.99999974E-6 : f32
    %51 = vector.broadcast %cst_32 : f32 to vector<1x77xf32>
    %52 = arith.addf %50, %51 : vector<1x77xf32>
    %53 = math.rsqrt %52 : vector<1x77xf32>
    %54 = vector.broadcast %29 : vector<1x77xf32> to vector<2x77xf32>
    %55 = arith.subf %15, %54 : vector<2x77xf32>
    %56 = vector.broadcast %53 : vector<1x77xf32> to vector<2x77xf32>
    %57 = arith.mulf %55, %56 : vector<2x77xf32>
    %cst_33 = arith.constant 2.000000e-01 : f32
    %58 = vector.broadcast %cst_33 : f32 to vector<2x77xf32>
    %59 = arith.mulf %58, %57 : vector<2x77xf32>
    %60 = arith.maximumf %57, %59 : vector<2x77xf32>
    %c0_34 = arith.constant 0 : index
    %c0_35 = arith.constant 0 : index
    %61 = vector.load %arg7[%c0_34, %c0_35] : memref<2x247xf32, #tpu.memory_space<vmem>>, vector<2x77xf32>
    tpu.vector_store %arg7[%c0_34, %c0_35], %60 {strides = array<i32>} : memref<2x247xf32, #tpu.memory_space<vmem>>, vector<2x77xf32>,
    %62 = vector.broadcast %29 : vector<1x77xf32> to vector<2x77xf32>
    %63 = arith.subf %16, %62 : vector<2x77xf32>
    %64 = vector.broadcast %53 : vector<1x77xf32> to vector<2x77xf32>
    %65 = arith.mulf %63, %64 : vector<2x77xf32>
    %cst_36 = arith.constant 2.000000e-01 : f32
    %66 = vector.broadcast %cst_36 : f32 to vector<2x77xf32>
    %67 = arith.mulf %66, %65 : vector<2x77xf32>
    %68 = arith.maximumf %65, %67 : vector<2x77xf32>
    %c0_37 = arith.constant 0 : index
    %c77_38 = arith.constant 77 : index
    %69 = vector.load %arg7[%c0_37, %c77_38] : memref<2x247xf32, #tpu.memory_space<vmem>>, vector<2x77xf32>
    tpu.vector_store %arg7[%c0_37, %c77_38], %68 {strides = array<i32>} : memref<2x247xf32, #tpu.memory_space<vmem>>, vector<2x77xf32>,
    %70 = vector.broadcast %29 : vector<1x77xf32> to vector<2x77xf32>
    %71 = arith.subf %17, %70 : vector<2x77xf32>
    %72 = vector.broadcast %53 : vector<1x77xf32> to vector<2x77xf32>
    %73 = arith.mulf %71, %72 : vector<2x77xf32>
    %cst_39 = arith.constant 2.000000e-01 : f32
    %74 = vector.broadcast %cst_39 : f32 to vector<2x77xf32>
    %75 = arith.mulf %74, %73 : vector<2x77xf32>
    %76 = arith.maximumf %73, %75 : vector<2x77xf32>
    %c0_40 = arith.constant 0 : index
    %c154_41 = arith.constant 154 : index
    %77 = vector.load %arg7[%c0_40, %c154_41] : memref<2x247xf32, #tpu.memory_space<vmem>>, vector<2x77xf32>
    tpu.vector_store %arg7[%c0_40, %c154_41], %76 {strides = array<i32>} : memref<2x247xf32, #tpu.memory_space<vmem>>, vector<2x77xf32>,
    %c0_42 = arith.constant 0 : index
    %c0_43 = arith.constant 0 : index
    %78 = vector.load %arg7[%c0_42, %c0_43] : memref<2x247xf32, #tpu.memory_space<vmem>>, vector<2x247xf32>
    %c0_44 = arith.constant 0 : index
    %c0_45 = arith.constant 0 : index
    %79 = vector.load %arg3[%c0_44, %c0_45] : memref<247x1024xf32, #tpu.memory_space<vmem>>, vector<247x1024xf32>
    %cst_46 = arith.constant dense<0.000000e+00> : vector<2x1024xf32>
    %80 = tpu.matmul %78, %79, %cst_46 {dimension_numbers = #tpu.dot_dimension_numbers<[1], [0], [0], [1], [0, 0, 1, 1], [], []>} : vector<2x247xf32>, vector<247x1024xf32>, vector<2x1024xf32> -> vector<2x1024xf32>
    %cst_47 = arith.constant dense<0.000000e+00> : vector<1024xf32>
    %81 = vector.multi_reduction <add>, %80, %cst_47 [0] : vector<2x1024xf32> to vector<1024xf32>
    %82 = vector.shape_cast %81 : vector<1024xf32> to vector<1x1024xf32>
    %cst_48 = arith.constant 2.000000e+00 : f32
    %83 = vector.broadcast %cst_48 : f32 to vector<1x1024xf32>
    %84 = arith.divf %82, %83 : vector<1x1024xf32>
    %85 = vector.broadcast %84 : vector<1x1024xf32> to vector<2x1024xf32>
    %86 = arith.subf %80, %85 : vector<2x1024xf32>
    %87 = arith.mulf %86, %86 : vector<2x1024xf32>
    %cst_49 = arith.constant dense<0.000000e+00> : vector<1024xf32>
    %88 = vector.multi_reduction <add>, %87, %cst_49 [0] : vector<2x1024xf32> to vector<1024xf32>
    %89 = vector.shape_cast %88 : vector<1024xf32> to vector<1x1024xf32>
    %cst_50 = arith.constant 2.000000e+00 : f32
    %90 = vector.broadcast %cst_50 : f32 to vector<1x1024xf32>
    %91 = arith.divf %89, %90 : vector<1x1024xf32>
    %92 = vector.broadcast %84 : vector<1x1024xf32> to vector<2x1024xf32>
    %93 = arith.subf %80, %92 : vector<2x1024xf32>
    %cst_51 = arith.constant 9.99999974E-6 : f32
    %94 = vector.broadcast %cst_51 : f32 to vector<1x1024xf32>
    %95 = arith.addf %91, %94 : vector<1x1024xf32>
    %96 = math.rsqrt %95 : vector<1x1024xf32>
    %97 = vector.broadcast %96 : vector<1x1024xf32> to vector<2x1024xf32>
    %98 = arith.mulf %93, %97 : vector<2x1024xf32>
    %cst_52 = arith.constant 2.000000e-01 : f32
    %99 = vector.broadcast %cst_52 : f32 to vector<2x1024xf32>
    %100 = arith.mulf %99, %98 : vector<2x1024xf32>
    %101 = arith.maximumf %98, %100 : vector<2x1024xf32>
    %c0_53 = arith.constant 0 : index
    %c0_54 = arith.constant 0 : index
    %102 = vector.load %arg4[%c0_53, %c0_54] : memref<1x1040xf32, #tpu.memory_space<vmem>>, vector<1x1024xf32>
    %103 = vector.broadcast %102 : vector<1x1024xf32> to vector<2x1024xf32>
    %104 = arith.mulf %101, %103 : vector<2x1024xf32>
    %cst_55 = arith.constant dense<0.000000e+00> : vector<2xf32>
    %105 = vector.multi_reduction <add>, %104, %cst_55 [1] : vector<2x1024xf32> to vector<2xf32>
    %106 = vector.shape_cast %105 : vector<2xf32> to vector<2x1xf32>
    %c0_56 = arith.constant 0 : index
    %c1024 = arith.constant 1024 : index
    %107 = vector.load %arg4[%c0_56, %c1024] : memref<1x1040xf32, #tpu.memory_space<vmem>>, vector<1x16xf32>
    %108 = vector.broadcast %107 : vector<1x16xf32> to vector<2x16xf32>
    %109 = arith.mulf %0, %108 : vector<2x16xf32>
    %cst_57 = arith.constant dense<0.000000e+00> : vector<2xf32>
    %110 = vector.multi_reduction <add>, %109, %cst_57 [1] : vector<2x16xf32> to vector<2xf32>
    %111 = vector.shape_cast %110 : vector<2xf32> to vector<2x1xf32>
    %112 = arith.addf %106, %111 : vector<2x1xf32>
    %cst_58 = arith.constant 0.000000e+00 : f32
    %113 = vector.broadcast %cst_58 : f32 to vector<2x16xf32>
    %c0_59 = arith.constant 0 : index
    %c112_60 = arith.constant 112 : index
    %114 = vector.load %arg5[%c0_59, %c112_60] : memref<2x128xf32, #tpu.memory_space<vmem>>, vector<2x16xf32>
    tpu.vector_store %arg5[%c0_59, %c112_60], %113 {strides = array<i32>} : memref<2x128xf32, #tpu.memory_space<vmem>>, vector<2x16xf32>,
    %c0_61 = arith.constant 0 : index
    %c112_62 = arith.constant 112 : index
    %115 = vector.load %arg5[%c0_61, %c112_62] : memref<2x128xf32, #tpu.memory_space<vmem>>, vector<2x1xf32>
    tpu.vector_store %arg5[%c0_61, %c112_62], %112 {strides = array<i32>} : memref<2x128xf32, #tpu.memory_space<vmem>>, vector<2x1xf32>,
    %116 = arith.negf %112 : vector<2x1xf32>
    %117 = math.exp %116 : vector<2x1xf32>
    %cst_63 = arith.constant 1.000000e+00 : f32
    %118 = vector.broadcast %cst_63 : f32 to vector<2x1xf32>
    %119 = arith.addf %118, %117 : vector<2x1xf32>
    %120 = arith.divf %118, %119 : vector<2x1xf32>
    %c0_64 = arith.constant 0 : index
    %c113 = arith.constant 113 : index
    %121 = vector.load %arg5[%c0_64, %c113] : memref<2x128xf32, #tpu.memory_space<vmem>>, vector<2x1xf32>
    tpu.vector_store %arg5[%c0_64, %c113], %120 {strides = array<i32>} : memref<2x128xf32, #tpu.memory_space<vmem>>, vector<2x1xf32>,
    return
  }
}

</mosaic_0001>

<llo_original>
// kernel: forward.1
$region0: #{forward.1}
  #allocation0 [shape = 'u32[]', space=smem, size = 0x4, offset = 0x4, fixed_abs, tag = 'smem constant byte address 0x4 - core index']
  #allocation1 [shape = 'u32[144,128]{1,0:T(1,128)}', space=vmem, size = 0x12000, scoped, tag = 'internal scratch']
  #allocation2 [shape = 'f32[2,128]{1,0:T(2,128)}', space=vmem, size = 0x400, scoped, tag = 'scratch operand']
  #allocation3 [shape = 'f32[2,247]{1,0:T(2,128)}', space=vmem, size = 0x800, scoped, tag = 'scratch operand']
  %s0 = inlined_call_operand.vmem [shape: f32[2,272], index: 0, kind: input, shape index: {}]
  %s1 = inlined_call_operand.vmem [shape: f32[272,112], index: 1, kind: input, shape index: {}]
  %s2 = inlined_call_operand.vmem [shape: f32[128,231], index: 2, kind: input, shape index: {}]
  %s3 = inlined_call_operand.hbm [shape: f32[247,1024], index: 3, kind: input, shape index: {}]
  %s4 = inlined_call_operand.vmem [shape: f32[1,1040], index: 4, kind: input, shape index: {}]
  %s5 = inlined_call_operand.vmem [shape: f32[2,128], index: 5, kind: output, shape index: {}]
  %s6 = sld [smem:[#allocation0]]
  $region34: #{forward.1} parent=0
    _
  %s8 = ssub.s32 1, %s6
  %s9 = scalar_select 0, %s8, %s6
  $region1: #{forward.1} parent=0
    #allocation4 [shape = 'u8[1015808]{0}', space=vmem, size = 0xf8000, scoped, tag = 'input window, operand 3, single buffered']
    #allocation5 [shape = 's32[1]{0}', space=sflag, size = 0x4, scoped, tag = 'scoped memory for forward.1']
    %10 = vsyncpa [#allocation5], 0
    // Predicated region
    $region2: #{forward.1} parent=1 // pred_check
      _
    $region3: #{forward.1} parent=1 // pred_check_branch
      %12 = sbr.rel (0) target = $region5
    $region4: #{forward.1} parent=1 // pred_region
      _
    $region5: #{forward.1} parent=1 // pred_fallthru
      _
    // Predicated region
    $region6: #{forward.1} parent=1 // pred_check
      _
    $region7: #{forward.1} parent=1 // pred_check_branch
      %14 = sbr.rel (0) target = $region9
    $region8: #{forward.1} parent=1 // pred_region
      _
    $region9: #{forward.1} parent=1 // pred_fallthru
      _
    // Predicated region
    $region10: #{forward.1} parent=1 // pred_check
      _
    $region11: #{forward.1} parent=1 // pred_check_branch
      %16 = sbr.rel (0) target = $region13
    $region12: #{forward.1} parent=1 // pred_region
      _
    $region13: #{forward.1} parent=1 // pred_fallthru
      _
    // Predicated region
    $region14: #{forward.1} parent=1 // pred_check
      _
    $region15: #{forward.1} parent=1 // pred_check_branch
      %18 = sbr.rel (0) target = $region17
    $region16: #{forward.1} parent=1 // pred_region
      %s20 = ssub.s32 31744, 31744
      %21 = vsyncadd [#allocation5], %s20
      %s22 = sshll.u32 [#allocation4], 4
      %s23 = int_to_ptr.vmem [resolvable:$true] %s22
      %28 = dma.hbm_to_vmem [thread:$0]  %s3, 31744, %s23, [#allocation5], 1024, 1024, 64
    $region17: #{forward.1} parent=1 // pred_fallthru
      _
    // Predicated region
    $region18: #{forward.1} parent=1 // pred_check
      _
    $region19: #{forward.1} parent=1 // pred_check_branch
      %30 = sbr.rel (0) target = $region21
    $region20: #{forward.1} parent=1 // pred_region
      _
    $region21: #{forward.1} parent=1 // pred_fallthru
      _
    // Predicated region
    $region22: #{forward.1} parent=1 // pred_check
      _
    $region23: #{forward.1} parent=1 // pred_check_branch
      %32 = sbr.rel (0) target = $region25
    $region24: #{forward.1} parent=1 // pred_region
      %33 = dma.done [#allocation5], 31744
    $region25: #{forward.1} parent=1 // pred_fallthru
      _
    %v34 = vld [vmem:[%s0 + $0x4] sm:$0x3]
    %v35 = vld [vmem:[%s0] sm:$0x3f]
    %v36 = vld [vmem:[%s1] sm:$0xff]
    %v37 = vld [vmem:[%s1 + $0x8] sm:$0xff]
    %v38 = vld [vmem:[%s1 + $0x10] sm:$0xff]
    %v39 = vld [vmem:[%s1 + $0x18] sm:$0xff]
    %v40 = vld [vmem:[%s1 + $0x20] sm:$0xff]
    %v41 = vld [vmem:[%s1 + $0x28] sm:$0xff]
    %v42 = vld [vmem:[%s1 + $0x30] sm:$0xff]
    %v43 = vld [vmem:[%s1 + $0x38] sm:$0xff]
    %v44 = vld [vmem:[%s1 + $0x40] sm:$0xff]
    %v45 = vld [vmem:[%s1 + $0x48] sm:$0xff]
    %v46 = vld [vmem:[%s1 + $0x50] sm:$0xff]
    %v47 = vld [vmem:[%s1 + $0x58] sm:$0xff]
    %v48 = vld [vmem:[%s1 + $0x60] sm:$0xff]
    %v49 = vld [vmem:[%s1 + $0x68] sm:$0xff]
    %v50 = vld [vmem:[%s1 + $0x70] sm:$0xff]
    %v51 = vld [vmem:[%s1 + $0x78] sm:$0xff]
    %v52 = vld [vmem:[%s1 + $0x80] sm:$0xff]
    %v53 = vld [vmem:[%s1 + $0x88] sm:$0xff]
    %v54 = vld [vmem:[%s1 + $0x90] sm:$0xff]
    %v55 = vld [vmem:[%s1 + $0x98] sm:$0xff]
    %v56 = vld [vmem:[%s1 + $0xa0] sm:$0xff]
    %v57 = vld [vmem:[%s1 + $0xa8] sm:$0xff]
    %v58 = vld [vmem:[%s1 + $0xb0] sm:$0xff]
    %v59 = vld [vmem:[%s1 + $0xb8] sm:$0xff]
    %v60 = vld [vmem:[%s1 + $0xc0] sm:$0xff]
    %v61 = vld [vmem:[%s1 + $0xc8] sm:$0xff]
    %v62 = vld [vmem:[%s1 + $0xd0] sm:$0xff]
    %v63 = vld [vmem:[%s1 + $0xd8] sm:$0xff]
    %v64 = vld [vmem:[%s1 + $0xe0] sm:$0xff]
    %v65 = vld [vmem:[%s1 + $0xe8] sm:$0xff]
    %v66 = vld [vmem:[%s1 + $0xf0] sm:$0xff]
    %v67 = vld [vmem:[%s1 + $0xf8] sm:$0xff]
    %v68 = vld [vmem:[%s1 + $0x100] sm:$0xff]
    %v69 = vld [vmem:[%s1 + $0x108] sm:$0xff]
    %v71 = vcombine.high %v35, %v35
    %v73 = vunpack.c.l.s4 1983009808
    %v74 = vunpack.c.0.s8 %v73
    %v75 = vlaneseq
    %v76 = vshrl.u32 %v75, 7
    %v77 = vsub.s32 %v74, %v76
    %v78 = vrot.slane %v35, %v77
    %v80 = vunpack.c.l.s4 1983009808
    %v81 = vunpack.c.0.s8 %v80
    %v82 = vlaneseq
    %v83 = vshrl.u32 %v82, 7
    %v84 = vsub.s32 %v81, %v83
    %v85 = vrot.slane %v71, %v84
    %v86 = vcombine.high %v78, %v78
    %vm89 = vcmask 130048
    %v90 = vsel %vm89, %v85, 0
    %92 = vmatprep.subr.mxu0 0.0
    %93 = vmatpush1.msra.mxu0 %v36
    %94 = vmatprep.subr.mxu0 0.0
    %95 = vmatpush1.msra.mxu0 %v37
    %96 = vmatprep.subr.mxu0 0.0
    %97 = vmatpush1.msra.mxu0 %v38
    %98 = vmatprep.subr.mxu0 0.0
    %99 = vmatpush1.msra.mxu0 %v39
    %100 = vmatprep.subr.mxu0 0.0
    %101 = vmatpush1.msra.mxu0 %v40
    %102 = vmatprep.subr.mxu0 0.0
    %103 = vmatpush1.msra.mxu0 %v41
    %104 = vmatprep.subr.mxu0 0.0
    %105 = vmatpush1.msra.mxu0 %v42
    %106 = vmatprep.subr.mxu0 0.0
    %107 = vmatpush1.msra.mxu0 %v43
    %108 = vmatprep.subr.mxu0 0.0
    %109 = vmatpush1.msra.mxu0 %v44
    %110 = vmatprep.subr.mxu0 0.0
    %111 = vmatpush1.msra.mxu0 %v45
    %112 = vmatprep.subr.mxu0 0.0
    %113 = vmatpush1.msra.mxu0 %v46
    %114 = vmatprep.subr.mxu0 0.0
    %115 = vmatpush1.msra.mxu0 %v47
    %116 = vmatprep.subr.mxu0 0.0
    %117 = vmatpush1.msra.mxu0 %v48
    %118 = vmatprep.subr.mxu0 0.0
    %119 = vmatpush1.msra.mxu0 %v49
    %120 = vmatprep.subr.mxu0 0.0
    %121 = vmatpush1.msra.mxu0 %v50
    %122 = vmatprep.subr.mxu0 0.0
    %123 = vmatpush1.msra.mxu0 %v51
    %124 = vmatprep.subr.mxu0 0.0
    %125 = vmatpush1.msra.mxu0 %v52
    %126 = vmatprep.subr.mxu0 0.0
    %127 = vmatpush1.msra.mxu0 %v53
    %128 = vmatprep.subr.mxu0 0.0
    %129 = vmatpush1.msra.mxu0 %v54
    %130 = vmatprep.subr.mxu0 0.0
    %131 = vmatpush1.msra.mxu0 %v55
    %132 = vmatprep.subr.mxu0 0.0
    %133 = vmatpush1.msra.mxu0 %v56
    %134 = vmatprep.subr.mxu0 0.0
    %135 = vmatpush1.msra.mxu0 %v57
    %136 = vmatprep.subr.mxu0 0.0
    %137 = vmatpush1.msra.mxu0 %v58
    %138 = vmatprep.subr.mxu0 0.0
    %139 = vmatpush1.msra.mxu0 %v59
    %140 = vmatprep.subr.mxu0 0.0
    %141 = vmatpush1.msra.mxu0 %v60
    %142 = vmatprep.subr.mxu0 0.0
    %143 = vmatpush1.msra.mxu0 %v61
    %144 = vmatprep.subr.mxu0 0.0
    %145 = vmatpush1.msra.mxu0 %v62
    %146 = vmatprep.subr.mxu0 0.0
    %147 = vmatpush1.msra.mxu0 %v63
    %148 = vmatprep.subr.mxu0 0.0
    %149 = vmatpush1.msra.mxu0 %v64
    %150 = vmatprep.subr.mxu0 0.0
    %151 = vmatpush1.msra.mxu0 %v65
    %152 = vmatprep.subr.mxu0 0.0
    %153 = vmatpush1.msra.mxu0 %v66
    %154 = vmatprep.subr.mxu0 0.0
    %155 = vmatpush1.msra.mxu0 %v67
    %156 = vmatprep.mubr.f32.mxu0 %v86
    %157 = vmatmul.mubr.f32.gmra.mrb[0].mxu0 %v78
    %v158 = vpop.f32.mrb[0].mxu0
    %v159 = vadd.f32 0.0, %v158
    %v160 = vpop.f32.mrb[0].mxu0
    %161 = vdwg.mxu0
    %162 = vmatprep.subr.mxu0 0.0
    %163 = vmatpush1.msra.mxu0 %v68
    %164 = vmatprep.subr.mxu0 0.0
    %165 = vmatpush1.msra.mxu0 %v69
    %166 = vmatprep.subr.mxu0 0.0
    %167 = vmatpush1.msra.mxu0 0.0
    %168 = vmatprep.subr.mxu0 0.0
    %169 = vmatpush1.msra.mxu0 0.0
    %170 = vmatprep.subr.mxu0 0.0
    %171 = vmatpush1.msra.mxu0 0.0
    %172 = vmatprep.subr.mxu0 0.0
    %173 = vmatpush1.msra.mxu0 0.0
    %174 = vmatprep.subr.mxu0 0.0
    %175 = vmatpush1.msra.mxu0 0.0
    %176 = vmatprep.subr.mxu0 0.0
    %177 = vmatpush1.msra.mxu0 0.0
    %178 = vmatprep.subr.mxu0 0.0
    %179 = vmatpush1.msra.mxu0 0.0
    %180 = vmatprep.subr.mxu0 0.0
    %181 = vmatpush1.msra.mxu0 0.0
    %182 = vmatprep.subr.mxu0 0.0
    %183 = vmatpush1.msra.mxu0 0.0
    %184 = vmatprep.subr.mxu0 0.0
    %185 = vmatpush1.msra.mxu0 0.0
    %186 = vmatprep.subr.mxu0 0.0
    %187 = vmatpush1.msra.mxu0 0.0
    %188 = vmatprep.subr.mxu0 0.0
    %189 = vmatpush1.msra.mxu0 0.0
    %190 = vmatprep.subr.mxu0 0.0
    %191 = vmatpush1.msra.mxu0 0.0
    %192 = vmatprep.subr.mxu0 0.0
    %193 = vmatpush1.msra.mxu0 0.0
    %194 = vmatprep.subr.mxu0 0.0
    %195 = vmatpush1.msra.mxu0 0.0
    %196 = vmatprep.subr.mxu0 0.0
    %197 = vmatpush1.msra.mxu0 0.0
    %198 = vmatprep.subr.mxu0 0.0
    %199 = vmatpush1.msra.mxu0 0.0
    %200 = vmatprep.subr.mxu0 0.0
    %201 = vmatpush1.msra.mxu0 0.0
    %202 = vmatprep.subr.mxu0 0.0
    %203 = vmatpush1.msra.mxu0 0.0
    %204 = vmatprep.subr.mxu0 0.0
    %205 = vmatpush1.msra.mxu0 0.0
    %206 = vmatprep.subr.mxu0 0.0
    %207 = vmatpush1.msra.mxu0 0.0
    %208 = vmatprep.subr.mxu0 0.0
    %209 = vmatpush1.msra.mxu0 0.0
    %210 = vmatprep.subr.mxu0 0.0
    %211 = vmatpush1.msra.mxu0 0.0
    %212 = vmatprep.subr.mxu0 0.0
    %213 = vmatpush1.msra.mxu0 0.0
    %214 = vmatprep.subr.mxu0 0.0
    %215 = vmatpush1.msra.mxu0 0.0
    %216 = vmatprep.subr.mxu0 0.0
    %217 = vmatpush1.msra.mxu0 0.0
    %218 = vmatprep.subr.mxu0 0.0
    %219 = vmatpush1.msra.mxu0 0.0
    %220 = vmatprep.subr.mxu0 0.0
    %221 = vmatpush1.msra.mxu0 0.0
    %222 = vmatprep.subr.mxu0 0.0
    %223 = vmatpush1.msra.mxu0 0.0
    %224 = vmatprep.subr.mxu0 0.0
    %225 = vmatpush1.msra.mxu0 0.0
    %226 = vmatprep.mubr.f32.mxu0 0.0
    %227 = vmatmul.mubr.f32.gmra.mrb[0].mxu0 %v90
    %v228 = vpop.f32.mrb[0].mxu0
    %v229 = vadd.f32 %v159, %v228
    %v230 = vpop.f32.mrb[0].mxu0
    %231 = vdwg.mxu0
    %v232 = vmul.f32 %v229, 0.2
    %v233 = vmax.f32 %v229, %v232
    %vm234 = vcmask 910336
    %235 = vst.msk [vmem:[%s5] sm:$0x3] %vm234, %v233
    %236 = vst.msk [vmem:[#allocation2] sm:$0x3] %vm234, %v233
    %v239 = vunpack.c.l.s4 1983009808
    %v240 = vunpack.c.0.s8 %v239
    %v241 = vlaneseq
    %v242 = vshrl.u32 %v241, 7
    %v243 = vsub.s32 %v240, %v242
    %v244 = vrot.slane %v34, %v243
    %245 = vrot.lane.b32.xlu0 %v244, 112
    %v246 = vpop.permute.xlu0 %245
    %vm248 = vcmask 1042304
    %249 = vst.msk [vmem:[#allocation2] sm:$0x3] %vm248, %v246
    %v250 = vld [vmem:[#allocation2] sm:$0x3]
    %v251 = vld [vmem:[%s2] sm:$0xff]
    %v252 = vld [vmem:[%s2 + $0x8] sm:$0xff]
    %v253 = vld [vmem:[%s2 + $0x10] sm:$0xff]
    %v254 = vld [vmem:[%s2 + $0x18] sm:$0xff]
    %v255 = vld [vmem:[%s2 + $0x20] sm:$0xff]
    %v256 = vld [vmem:[%s2 + $0x28] sm:$0xff]
    %v257 = vld [vmem:[%s2 + $0x30] sm:$0xff]
    %v258 = vld [vmem:[%s2 + $0x38] sm:$0xff]
    %v259 = vld [vmem:[%s2 + $0x40] sm:$0xff]
    %v260 = vld [vmem:[%s2 + $0x48] sm:$0xff]
    %v261 = vld [vmem:[%s2 + $0x50] sm:$0xff]
    %v262 = vld [vmem:[%s2 + $0x58] sm:$0xff]
    %v263 = vld [vmem:[%s2 + $0x60] sm:$0xff]
    %v264 = vld [vmem:[%s2 + $0x68] sm:$0xff]
    %v265 = vld [vmem:[%s2 + $0x70] sm:$0xff]
    %v266 = vld [vmem:[%s2 + $0x78] sm:$0xff]
    %v267 = vld [vmem:[%s2 + $0x80] sm:$0xff]
    %v268 = vld [vmem:[%s2 + $0x88] sm:$0xff]
    %v269 = vld [vmem:[%s2 + $0x90] sm:$0xff]
    %v270 = vld [vmem:[%s2 + $0x98] sm:$0xff]
    %v271 = vld [vmem:[%s2 + $0xa0] sm:$0xff]
    %v272 = vld [vmem:[%s2 + $0xa8] sm:$0xff]
    %v273 = vld [vmem:[%s2 + $0xb0] sm:$0xff]
    %v274 = vld [vmem:[%s2 + $0xb8] sm:$0xff]
    %v275 = vld [vmem:[%s2 + $0xc0] sm:$0xff]
    %v276 = vld [vmem:[%s2 + $0xc8] sm:$0xff]
    %v277 = vld [vmem:[%s2 + $0xd0] sm:$0xff]
    %v278 = vld [vmem:[%s2 + $0xd8] sm:$0xff]
    %v279 = vld [vmem:[%s2 + $0xe0] sm:$0xff]
    %v280 = vld [vmem:[%s2 + $0xe8] sm:$0xff]
    %v281 = vld [vmem:[%s2 + $0xf0] sm:$0xff]
    %v282 = vld [vmem:[%s2 + $0xf8] sm:$0xff]
    %283 = vmatprep.subr.mxu0 %v252
    %284 = vmatpush1.msra.mxu0 %v251
    %285 = vmatprep.subr.mxu0 %v254
    %286 = vmatpush1.msra.mxu0 %v253
    %287 = vmatprep.subr.mxu0 %v256
    %288 = vmatpush1.msra.mxu0 %v255
    %289 = vmatprep.subr.mxu0 %v258
    %290 = vmatpush1.msra.mxu0 %v257
    %291 = vmatprep.subr.mxu0 %v260
    %292 = vmatpush1.msra.mxu0 %v259
    %293 = vmatprep.subr.mxu0 %v262
    %294 = vmatpush1.msra.mxu0 %v261
    %295 = vmatprep.subr.mxu0 %v264
    %296 = vmatpush1.msra.mxu0 %v263
    %297 = vmatprep.subr.mxu0 %v266
    %298 = vmatpush1.msra.mxu0 %v265
    %299 = vmatprep.subr.mxu0 %v268
    %300 = vmatpush1.msra.mxu0 %v267
    %301 = vmatprep.subr.mxu0 %v270
    %302 = vmatpush1.msra.mxu0 %v269
    %303 = vmatprep.subr.mxu0 %v272
    %304 = vmatpush1.msra.mxu0 %v271
    %305 = vmatprep.subr.mxu0 %v274
    %306 = vmatpush1.msra.mxu0 %v273
    %307 = vmatprep.subr.mxu0 %v276
    %308 = vmatpush1.msra.mxu0 %v275
    %309 = vmatprep.subr.mxu0 %v278
    %310 = vmatpush1.msra.mxu0 %v277
    %311 = vmatprep.subr.mxu0 %v280
    %312 = vmatpush1.msra.mxu0 %v279
    %313 = vmatprep.subr.mxu0 %v282
    %314 = vmatpush1.msra.mxu0 %v281
    %315 = vmatprep.subr.mxu0 0.0
    %316 = vmatpush1.msra.mxu0 0.0
    %317 = vmatprep.subr.mxu0 0.0
    %318 = vmatpush1.msra.mxu0 0.0
    %319 = vmatprep.subr.mxu0 0.0
    %320 = vmatpush1.msra.mxu0 0.0
    %321 = vmatprep.subr.mxu0 0.0
    %322 = vmatpush1.msra.mxu0 0.0
    %323 = vmatprep.subr.mxu0 0.0
    %324 = vmatpush1.msra.mxu0 0.0
    %325 = vmatprep.subr.mxu0 0.0
    %326 = vmatpush1.msra.mxu0 0.0
    %327 = vmatprep.subr.mxu0 0.0
    %328 = vmatpush1.msra.mxu0 0.0
    %329 = vmatprep.subr.mxu0 0.0
    %330 = vmatpush1.msra.mxu0 0.0
    %331 = vmatprep.subr.mxu0 0.0
    %332 = vmatpush1.msra.mxu0 0.0
    %333 = vmatprep.subr.mxu0 0.0
    %334 = vmatpush1.msra.mxu0 0.0
    %335 = vmatprep.subr.mxu0 0.0
    %336 = vmatpush1.msra.mxu0 0.0
    %337 = vmatprep.subr.mxu0 0.0
    %338 = vmatpush1.msra.mxu0 0.0
    %339 = vmatprep.subr.mxu0 0.0
    %340 = vmatpush1.msra.mxu0 0.0
    %341 = vmatprep.subr.mxu0 0.0
    %342 = vmatpush1.msra.mxu0 0.0
    %343 = vmatprep.subr.mxu0 0.0
    %344 = vmatpush1.msra.mxu0 0.0
    %345 = vmatprep.subr.mxu0 0.0
    %346 = vmatpush1.msra.mxu0 0.0
    %347 = vmatprep.mubr.f32.mxu0 0.0
    %348 = vmatmul.mubr.f32.gmra.mrb[0].mxu0 %v250
    %v349 = vpop.f32.mrb[0].mxu0
    %v350 = vadd.f32 0.0, %v349
    %v351 = vpop.f32.mrb[0].mxu0
    %v352 = vadd.f32 0.0, %v351
    %353 = vdwg.mxu0
    %v356 = vcombine.low %v350, %v352
    %v358 = vunpack.c.l.s4 1983009808
    %v359 = vunpack.c.0.s8 %v358
    %v360 = vlaneseq
    %v361 = vshrl.u32 %v360, 7
    %v362 = vsub.s32 %v359, %v361
    %v363 = vrot.slane %v356, %v362
    %vm365 = vcmask 1041408
    %vm366 = vcmask 838658
    %vm367 = vmor %vm366, %vm365
    %368 = vst.msk [vmem:[#allocation3] sm:$0xf] %vm367, %v363
    %369 = vrot.lane.b32.xlu0 %v34, 103
    %v370 = vpop.permute.xlu0 %369
    %vm372 = vcmask 968504
    %373 = vst.msk [vmem:[#allocation3 + $0x2] sm:$0x3] %vm372, %v370
    %v374 = vld [vmem:[#allocation3] sm:$0x3]
    %v375 = vld [vmem:[#allocation3] sm:$0xf]
    %v376 = vld [vmem:[#allocation3 + $0x2] sm:$0x3]
    %vm377 = vcmask 623616
    %v378 = vsel %vm377, %v374, 0.0
    %v379 = vrot.slane %v378, 4
    %v380 = vadd.f32 %v378, %v379
    %v381 = vrot.slane %v380, 2
    %v382 = vadd.f32 %v380, %v381
    %v383 = vrot.slane %v382, 1
    %v384 = vadd.f32 %v382, %v383
    %v385 = vadd.f32 %v384, 0.0
    %v388 = vunpack.c.l.s4 1983009808
    %v389 = vunpack.c.0.s8 %v388
    %v390 = vlaneseq
    %v391 = vshrl.u32 %v390, 7
    %v392 = vsub.s32 %v389, %v391
    %v393 = vrot.slane %v375, %v392
    %v394 = vcombine.high %v393, %v393
    %vm397 = vcmask 1042024
    %v398 = vsel %vm397, %v393, 0.0
    %v399 = vrot.slane %v398, 4
    %v400 = vadd.f32 %v398, %v399
    %v401 = vrot.slane %v400, 2
    %v402 = vadd.f32 %v400, %v401
    %v403 = vrot.slane %v402, 1
    %v404 = vadd.f32 %v402, %v403
    %vm405 = vcmask 205824
    %v406 = vsel %vm405, %v394, 0.0
    %v407 = vrot.slane %v406, 4
    %v408 = vadd.f32 %v406, %v407
    %v409 = vrot.slane %v408, 2
    %v410 = vadd.f32 %v408, %v409
    %v411 = vrot.slane %v410, 1
    %v412 = vadd.f32 %v410, %v411
    %415 = vrot.lane.b32.xlu0 %v404, 51
    %v416 = vpop.permute.xlu0 %415
    %417 = vrot.lane.b32.xlu0 %v412, 51
    %v418 = vpop.permute.xlu0 %417
    %vm419 = vcmask 416768
    %v420 = vsel %vm419, %v416, %v418
    %v422 = vadd.f32 %v385, %v420
    %vm423 = vcmask 836816
    %v424 = vsel %vm423, %v376, 0.0
    %v425 = vrot.slane %v424, 4
    %v426 = vadd.f32 %v424, %v425
    %v427 = vrot.slane %v426, 2
    %v428 = vadd.f32 %v426, %v427
    %v429 = vrot.slane %v428, 1
    %v430 = vadd.f32 %v428, %v429
    %432 = vrot.lane.b32.xlu0 %v430, 102
    %v433 = vpop.permute.xlu0 %432
    %v435 = vadd.f32 %v422, %v433
    %v436 = vrcp.pop 6.0
    %v437 = vmul.f32 %v435, %v436
    %v438 = vlaneseq
    %v439 = vshrl.u32 %v438, 7
    %v440 = vsub.s32 0, %v439
    %v441 = vrot.slane %v437, %v440
    %v442 = vsub.f32 %v374, %v441
    %v443 = vmul.f32 %v442, %v442
    %v444 = vsel %vm377, %v443, 0.0
    %v445 = vrot.slane %v444, 4
    %v446 = vadd.f32 %v444, %v445
    %v447 = vrot.slane %v446, 2
    %v448 = vadd.f32 %v446, %v447
    %v449 = vrot.slane %v448, 1
    %v450 = vadd.f32 %v448, %v449
    %v451 = vadd.f32 %v450, 0.0
    %v454 = vunpack.c.l.s4 1983009808
    %v455 = vunpack.c.0.s8 %v454
    %v456 = vlaneseq
    %v457 = vshrl.u32 %v456, 7
    %v458 = vsub.s32 %v455, %v457
    %v459 = vrot.slane %v441, %v458
    %460 = vrot.lane.b32.xlu0 %v459, 77
    %v461 = vpop.permute.xlu0 %460
    %v462 = vrot.slane %v461, 6
    %vm463 = vcmask 629760
    %v464 = vsel %vm463, %v462, %v461
    %v466 = vsub.f32 %v375, %v464
    %v467 = vmul.f32 %v466, %v466
    %v470 = vunpack.c.l.s4 1983009808
    %v471 = vunpack.c.0.s8 %v470
    %v472 = vlaneseq
    %v473 = vshrl.u32 %v472, 7
    %v474 = vsub.s32 %v471, %v473
    %v475 = vrot.slane %v467, %v474
    %v476 = vcombine.high %v475, %v475
    %v479 = vsel %vm397, %v475, 0.0
    %v480 = vrot.slane %v479, 4
    %v481 = vadd.f32 %v479, %v480
    %v482 = vrot.slane %v481, 2
    %v483 = vadd.f32 %v481, %v482
    %v484 = vrot.slane %v483, 1
    %v485 = vadd.f32 %v483, %v484
    %v486 = vsel %vm405, %v476, 0.0
    %v487 = vrot.slane %v486, 4
    %v488 = vadd.f32 %v486, %v487
    %v489 = vrot.slane %v488, 2
    %v490 = vadd.f32 %v488, %v489
    %v491 = vrot.slane %v490, 1
    %v492 = vadd.f32 %v490, %v491
    %495 = vrot.lane.b32.xlu0 %v485, 51
    %v496 = vpop.permute.xlu0 %495
    %497 = vrot.lane.b32.xlu0 %v492, 51
    %v498 = vpop.permute.xlu0 %497
    %v499 = vsel %vm419, %v496, %v498
    %v501 = vadd.f32 %v451, %v499
    %502 = vrot.lane.b32.xlu0 %v459, 26
    %v503 = vpop.permute.xlu0 %502
    %v505 = vsub.f32 %v376, %v503
    %v506 = vmul.f32 %v505, %v505
    %v507 = vsel %vm423, %v506, 0.0
    %v508 = vrot.slane %v507, 4
    %v509 = vadd.f32 %v507, %v508
    %v510 = vrot.slane %v509, 2
    %v511 = vadd.f32 %v509, %v510
    %v512 = vrot.slane %v511, 1
    %v513 = vadd.f32 %v511, %v512
    %515 = vrot.lane.b32.xlu0 %v513, 102
    %v516 = vpop.permute.xlu0 %515
    %v518 = vadd.f32 %v501, %v516
    %v519 = vmul.f32 %v518, %v436
    %v520 = vadd.f32 %v519, 1e-05
    %v521 = vrsqrt.pop %v520
    %v522 = vlaneseq
    %v523 = vshrl.u32 %v522, 7
    %v524 = vsub.s32 0, %v523
    %v525 = vrot.slane %v521, %v524
    %v526 = vmul.f32 %v442, %v525
    %v527 = vmul.f32 %v526, 0.2
    %v528 = vmax.f32 %v526, %v527
    %529 = vst.msk [vmem:[#allocation3] sm:$0x3] %vm377, %v528
    %v532 = vunpack.c.l.s4 1983009808
    %v533 = vunpack.c.0.s8 %v532
    %v534 = vlaneseq
    %v535 = vshrl.u32 %v534, 7
    %v536 = vsub.s32 %v533, %v535
    %v537 = vrot.slane %v525, %v536
    %538 = vrot.lane.b32.xlu0 %v537, 77
    %v539 = vpop.permute.xlu0 %538
    %v540 = vrot.slane %v539, 6
    %v541 = vsel %vm463, %v540, %v539
    %v543 = vmul.f32 %v466, %v541
    %v544 = vmul.f32 %v543, 0.2
    %v545 = vmax.f32 %v543, %v544
    %vm546 = vcmask 207874
    %vm547 = vmor %vm546, %vm397
    %548 = vst.msk [vmem:[#allocation3] sm:$0xf] %vm547, %v545
    %549 = vrot.lane.b32.xlu0 %v537, 26
    %v550 = vpop.permute.xlu0 %549
    %v552 = vmul.f32 %v505, %v550
    %v553 = vmul.f32 %v552, 0.2
    %v554 = vmax.f32 %v552, %v553
    %555 = vst.msk [vmem:[#allocation3 + $0x2] sm:$0x3] %vm423, %v554
    %v556 = vld [vmem:[#allocation3] sm:$0xf]
    %v557 = vld [vmem:[#allocation4] sm:$0xff]
    %v558 = vld [vmem:[#allocation4 + $0x8] sm:$0xff]
    %v559 = vld [vmem:[#allocation4 + $0x10] sm:$0xff]
    %v560 = vld [vmem:[#allocation4 + $0x18] sm:$0xff]
    %v561 = vld [vmem:[#allocation4 + $0x20] sm:$0xff]
    %v562 = vld [vmem:[#allocation4 + $0x28] sm:$0xff]
    %v563 = vld [vmem:[#allocation4 + $0x30] sm:$0xff]
    %v564 = vld [vmem:[#allocation4 + $0x38] sm:$0xff]
    %v565 = vld [vmem:[#allocation4 + $0x40] sm:$0xff]
    %v566 = vld [vmem:[#allocation4 + $0x48] sm:$0xff]
    %v567 = vld [vmem:[#allocation4 + $0x50] sm:$0xff]
    %v568 = vld [vmem:[#allocation4 + $0x58] sm:$0xff]
    %v569 = vld [vmem:[#allocation4 + $0x60] sm:$0xff]
    %v570 = vld [vmem:[#allocation4 + $0x68] sm:$0xff]
    %v571 = vld [vmem:[#allocation4 + $0x70] sm:$0xff]
    %v572 = vld [vmem:[#allocation4 + $0x78] sm:$0xff]
    %v573 = vld [vmem:[#allocation4 + $0x80] sm:$0xff]
    %v574 = vld [vmem:[#allocation4 + $0x88] sm:$0xff]
    %v575 = vld [vmem:[#allocation4 + $0x90] sm:$0xff]
    %v576 = vld [vmem:[#allocation4 + $0x98] sm:$0xff]
    %v577 = vld [vmem:[#allocation4 + $0xa0] sm:$0xff]
    %v578 = vld [vmem:[#allocation4 + $0xa8] sm:$0xff]
    %v579 = vld [vmem:[#allocation4 + $0xb0] sm:$0xff]
    %v580 = vld [vmem:[#allocation4 + $0xb8] sm:$0xff]
    %v581 = vld [vmem:[#allocation4 + $0xc0] sm:$0xff]
    %v582 = vld [vmem:[#allocation4 + $0xc8] sm:$0xff]
    %v583 = vld [vmem:[#allocation4 + $0xd0] sm:$0xff]
    %v584 = vld [vmem:[#allocation4 + $0xd8] sm:$0xff]
    %v585 = vld [vmem:[#allocation4 + $0xe0] sm:$0xff]
    %v586 = vld [vmem:[#allocation4 + $0xe8] sm:$0xff]
    %v587 = vld [vmem:[#allocation4 + $0xf0] sm:$0xff]
    %v588 = vld [vmem:[#allocation4 + $0xf8] sm:$0xff]
    %v589 = vld [vmem:[#allocation4 + $0x100] sm:$0xff]
    %v590 = vld [vmem:[#allocation4 + $0x108] sm:$0xff]
    %v591 = vld [vmem:[#allocation4 + $0x110] sm:$0xff]
    %v592 = vld [vmem:[#allocation4 + $0x118] sm:$0xff]
    %v593 = vld [vmem:[#allocation4 + $0x120] sm:$0xff]
    %v594 = vld [vmem:[#allocation4 + $0x128] sm:$0xff]
    %v595 = vld [vmem:[#allocation4 + $0x130] sm:$0xff]
    %v596 = vld [vmem:[#allocation4 + $0x138] sm:$0xff]
    %v597 = vld [vmem:[#allocation4 + $0x140] sm:$0xff]
    %v598 = vld [vmem:[#allocation4 + $0x148] sm:$0xff]
    %v599 = vld [vmem:[#allocation4 + $0x150] sm:$0xff]
    %v600 = vld [vmem:[#allocation4 + $0x158] sm:$0xff]
    %v601 = vld [vmem:[#allocation4 + $0x160] sm:$0xff]
    %v602 = vld [vmem:[#allocation4 + $0x168] sm:$0xff]
    %v603 = vld [vmem:[#allocation4 + $0x170] sm:$0xff]
    %v604 = vld [vmem:[#allocation4 + $0x178] sm:$0xff]
    %v605 = vld [vmem:[#allocation4 + $0x180] sm:$0xff]
    %v606 = vld [vmem:[#allocation4 + $0x188] sm:$0xff]
    %v607 = vld [vmem:[#allocation4 + $0x190] sm:$0xff]
    %v608 = vld [vmem:[#allocation4 + $0x198] sm:$0xff]
    %v609 = vld [vmem:[#allocation4 + $0x1a0] sm:$0xff]
    %v610 = vld [vmem:[#allocation4 + $0x1a8] sm:$0xff]
    %v611 = vld [vmem:[#allocation4 + $0x1b0] sm:$0xff]
    %v612 = vld [vmem:[#allocation4 + $0x1b8] sm:$0xff]
    %v613 = vld [vmem:[#allocation4 + $0x1c0] sm:$0xff]
    %v614 = vld [vmem:[#allocation4 + $0x1c8] sm:$0xff]
    %v615 = vld [vmem:[#allocation4 + $0x1d0] sm:$0xff]
    %v616 = vld [vmem:[#allocation4 + $0x1d8] sm:$0xff]
    %v617 = vld [vmem:[#allocation4 + $0x1e0] sm:$0xff]
    %v618 = vld [vmem:[#allocation4 + $0x1e8] sm:$0xff]
    %v619 = vld [vmem:[#allocation4 + $0x1f0] sm:$0xff]
    %v620 = vld [vmem:[#allocation4 + $0x1f8] sm:$0xff]
    %v621 = vld [vmem:[#allocation4 + $0x200] sm:$0xff]
    %v622 = vld [vmem:[#allocation4 + $0x208] sm:$0xff]
    %v623 = vld [vmem:[#allocation4 + $0x210] sm:$0xff]
    %v624 = vld [vmem:[#allocation4 + $0x218] sm:$0xff]
    %v625 = vld [vmem:[#allocation4 + $0x220] sm:$0xff]
    %v626 = vld [vmem:[#allocation4 + $0x228] sm:$0xff]
    %v627 = vld [vmem:[#allocation4 + $0x230] sm:$0xff]
    %v628 = vld [vmem:[#allocation4 + $0x238] sm:$0xff]
    %v629 = vld [vmem:[#allocation4 + $0x240] sm:$0xff]
    %v630 = vld [vmem:[#allocation4 + $0x248] sm:$0xff]
    %v631 = vld [vmem:[#allocation4 + $0x250] sm:$0xff]
    %v632 = vld [vmem:[#allocation4 + $0x258] sm:$0xff]
    %v633 = vld [vmem:[#allocation4 + $0x260] sm:$0xff]
    %v634 = vld [vmem:[#allocation4 + $0x268] sm:$0xff]
    %v635 = vld [vmem:[#allocation4 + $0x270] sm:$0xff]
    %v636 = vld [vmem:[#allocation4 + $0x278] sm:$0xff]
    %v637 = vld [vmem:[#allocation4 + $0x280] sm:$0xff]
    %v638 = vld [vmem:[#allocation4 + $0x288] sm:$0xff]
    %v639 = vld [vmem:[#allocation4 + $0x290] sm:$0xff]
    %v640 = vld [vmem:[#allocation4 + $0x298] sm:$0xff]
    %v641 = vld [vmem:[#allocation4 + $0x2a0] sm:$0xff]
    %v642 = vld [vmem:[#allocation4 + $0x2a8] sm:$0xff]
    %v643 = vld [vmem:[#allocation4 + $0x2b0] sm:$0xff]
    %v644 = vld [vmem:[#allocation4 + $0x2b8] sm:$0xff]
    %v645 = vld [vmem:[#allocation4 + $0x2c0] sm:$0xff]
    %v646 = vld [vmem:[#allocation4 + $0x2c8] sm:$0xff]
    %v647 = vld [vmem:[#allocation4 + $0x2d0] sm:$0xff]
    %v648 = vld [vmem:[#allocation4 + $0x2d8] sm:$0xff]
    %v649 = vld [vmem:[#allocation4 + $0x2e0] sm:$0xff]
    %v650 = vld [vmem:[#allocation4 + $0x2e8] sm:$0xff]
    %v651 = vld [vmem:[#allocation4 + $0x2f0] sm:$0xff]
    %v652 = vld [vmem:[#allocation4 + $0x2f8] sm:$0xff]
    %v653 = vld [vmem:[#allocation4 + $0x300] sm:$0xff]
    %v654 = vld [vmem:[#allocation4 + $0x308] sm:$0xff]
    %v655 = vld [vmem:[#allocation4 + $0x310] sm:$0xff]
    %v656 = vld [vmem:[#allocation4 + $0x318] sm:$0xff]
    %v657 = vld [vmem:[#allocation4 + $0x320] sm:$0xff]
    %v658 = vld [vmem:[#allocation4 + $0x328] sm:$0xff]
    %v659 = vld [vmem:[#allocation4 + $0x330] sm:$0xff]
    %v660 = vld [vmem:[#allocation4 + $0x338] sm:$0xff]
    %v661 = vld [vmem:[#allocation4 + $0x340] sm:$0xff]
    %v662 = vld [vmem:[#allocation4 + $0x348] sm:$0xff]
    %v663 = vld [vmem:[#allocation4 + $0x350] sm:$0xff]
    %v664 = vld [vmem:[#allocation4 + $0x358] sm:$0xff]
    %v665 = vld [vmem:[#allocation4 + $0x360] sm:$0xff]
    %v666 = vld [vmem:[#allocation4 + $0x368] sm:$0xff]
    %v667 = vld [vmem:[#allocation4 + $0x370] sm:$0xff]
    %v668 = vld [vmem:[#allocation4 + $0x378] sm:$0xff]
    %v669 = vld [vmem:[#allocation4 + $0x380] sm:$0xff]
    %v670 = vld [vmem:[#allocation4 + $0x388] sm:$0xff]
    %v671 = vld [vmem:[#allocation4 + $0x390] sm:$0xff]
    %v672 = vld [vmem:[#allocation4 + $0x398] sm:$0xff]
    %v673 = vld [vmem:[#allocation4 + $0x3a0] sm:$0xff]
    %v674 = vld [vmem:[#allocation4 + $0x3a8] sm:$0xff]
    %v675 = vld [vmem:[#allocation4 + $0x3b0] sm:$0xff]
    %v676 = vld [vmem:[#allocation4 + $0x3b8] sm:$0xff]
    %v677 = vld [vmem:[#allocation4 + $0x3c0] sm:$0xff]
    %v678 = vld [vmem:[#allocation4 + $0x3c8] sm:$0xff]
    %v679 = vld [vmem:[#allocation4 + $0x3d0] sm:$0xff]
    %v680 = vld [vmem:[#allocation4 + $0x3d8] sm:$0xff]
    %v681 = vld [vmem:[#allocation4 + $0x3e0] sm:$0xff]
    %v682 = vld [vmem:[#allocation4 + $0x3e8] sm:$0xff]
    %v683 = vld [vmem:[#allocation4 + $0x3f0] sm:$0xff]
    %v684 = vld [vmem:[#allocation4 + $0x3f8] sm:$0xff]
    %v685 = vld [vmem:[#allocation4 + $0x400] sm:$0xff]
    %v686 = vld [vmem:[#allocation4 + $0x408] sm:$0xff]
    %v687 = vld [vmem:[#allocation4 + $0x410] sm:$0xff]
    %v688 = vld [vmem:[#allocation4 + $0x418] sm:$0xff]
    %v689 = vld [vmem:[#allocation4 + $0x420] sm:$0xff]
    %v690 = vld [vmem:[#allocation4 + $0x428] sm:$0xff]
    %v691 = vld [vmem:[#allocation4 + $0x430] sm:$0xff]
    %v692 = vld [vmem:[#allocation4 + $0x438] sm:$0xff]
    %v693 = vld [vmem:[#allocation4 + $0x440] sm:$0xff]
    %v694 = vld [vmem:[#allocation4 + $0x448] sm:$0xff]
    %v695 = vld [vmem:[#allocation4 + $0x450] sm:$0xff]
    %v696 = vld [vmem:[#allocation4 + $0x458] sm:$0xff]
    %v697 = vld [vmem:[#allocation4 + $0x460] sm:$0xff]
    %v698 = vld [vmem:[#allocation4 + $0x468] sm:$0xff]
    %v699 = vld [vmem:[#allocation4 + $0x470] sm:$0xff]
    %v700 = vld [vmem:[#allocation4 + $0x478] sm:$0xff]
    %v701 = vld [vmem:[#allocation4 + $0x480] sm:$0xff]
    %v702 = vld [vmem:[#allocation4 + $0x488] sm:$0xff]
    %v703 = vld [vmem:[#allocation4 + $0x490] sm:$0xff]
    %v704 = vld [vmem:[#allocation4 + $0x498] sm:$0xff]
    %v705 = vld [vmem:[#allocation4 + $0x4a0] sm:$0xff]
    %v706 = vld [vmem:[#allocation4 + $0x4a8] sm:$0xff]
    %v707 = vld [vmem:[#allocation4 + $0x4b0] sm:$0xff]
    %v708 = vld [vmem:[#allocation4 + $0x4b8] sm:$0xff]
    %v709 = vld [vmem:[#allocation4 + $0x4c0] sm:$0xff]
    %v710 = vld [vmem:[#allocation4 + $0x4c8] sm:$0xff]
    %v711 = vld [vmem:[#allocation4 + $0x4d0] sm:$0xff]
    %v712 = vld [vmem:[#allocation4 + $0x4d8] sm:$0xff]
    %v713 = vld [vmem:[#allocation4 + $0x4e0] sm:$0xff]
    %v714 = vld [vmem:[#allocation4 + $0x4e8] sm:$0xff]
    %v715 = vld [vmem:[#allocation4 + $0x4f0] sm:$0xff]
    %v716 = vld [vmem:[#allocation4 + $0x4f8] sm:$0xff]
    %v717 = vld [vmem:[#allocation4 + $0x500] sm:$0xff]
    %v718 = vld [vmem:[#allocation4 + $0x508] sm:$0xff]
    %v719 = vld [vmem:[#allocation4 + $0x510] sm:$0xff]
    %v720 = vld [vmem:[#allocation4 + $0x518] sm:$0xff]
    %v721 = vld [vmem:[#allocation4 + $0x520] sm:$0xff]
    %v722 = vld [vmem:[#allocation4 + $0x528] sm:$0xff]
    %v723 = vld [vmem:[#allocation4 + $0x530] sm:$0xff]
    %v724 = vld [vmem:[#allocation4 + $0x538] sm:$0xff]
    %v725 = vld [vmem:[#allocation4 + $0x540] sm:$0xff]
    %v726 = vld [vmem:[#allocation4 + $0x548] sm:$0xff]
    %v727 = vld [vmem:[#allocation4 + $0x550] sm:$0xff]
    %v728 = vld [vmem:[#allocation4 + $0x558] sm:$0xff]
    %v729 = vld [vmem:[#allocation4 + $0x560] sm:$0xff]
    %v730 = vld [vmem:[#allocation4 + $0x568] sm:$0xff]
    %v731 = vld [vmem:[#allocation4 + $0x570] sm:$0xff]
    %v732 = vld [vmem:[#allocation4 + $0x578] sm:$0xff]
    %v733 = vld [vmem:[#allocation4 + $0x580] sm:$0xff]
    %v734 = vld [vmem:[#allocation4 + $0x588] sm:$0xff]
    %v735 = vld [vmem:[#allocation4 + $0x590] sm:$0xff]
    %v736 = vld [vmem:[#allocation4 + $0x598] sm:$0xff]
    %v737 = vld [vmem:[#allocation4 + $0x5a0] sm:$0xff]
    %v738 = vld [vmem:[#allocation4 + $0x5a8] sm:$0xff]
    %v739 = vld [vmem:[#allocation4 + $0x5b0] sm:$0xff]
    %v740 = vld [vmem:[#allocation4 + $0x5b8] sm:$0xff]
    %v741 = vld [vmem:[#allocation4 + $0x5c0] sm:$0xff]
    %v742 = vld [vmem:[#allocation4 + $0x5c8] sm:$0xff]
    %v743 = vld [vmem:[#allocation4 + $0x5d0] sm:$0xff]
    %v744 = vld [vmem:[#allocation4 + $0x5d8] sm:$0xff]
    %v745 = vld [vmem:[#allocation4 + $0x5e0] sm:$0xff]
    %v746 = vld [vmem:[#allocation4 + $0x5e8] sm:$0xff]
    %v747 = vld [vmem:[#allocation4 + $0x5f0] sm:$0xff]
    %v748 = vld [vmem:[#allocation4 + $0x5f8] sm:$0xff]
    %v749 = vld [vmem:[#allocation4 + $0x600] sm:$0xff]
    %v750 = vld [vmem:[#allocation4 + $0x608] sm:$0xff]
    %v751 = vld [vmem:[#allocation4 + $0x610] sm:$0xff]
    %v752 = vld [vmem:[#allocation4 + $0x618] sm:$0xff]
    %v753 = vld [vmem:[#allocation4 + $0x620] sm:$0xff]
    %v754 = vld [vmem:[#allocation4 + $0x628] sm:$0xff]
    %v755 = vld [vmem:[#allocation4 + $0x630] sm:$0xff]
    %v756 = vld [vmem:[#allocation4 + $0x638] sm:$0xff]
    %v757 = vld [vmem:[#allocation4 + $0x640] sm:$0xff]
    %v758 = vld [vmem:[#allocation4 + $0x648] sm:$0xff]
    %v759 = vld [vmem:[#allocation4 + $0x650] sm:$0xff]
    %v760 = vld [vmem:[#allocation4 + $0x658] sm:$0xff]
    %v761 = vld [vmem:[#allocation4 + $0x660] sm:$0xff]
    %v762 = vld [vmem:[#allocation4 + $0x668] sm:$0xff]
    %v763 = vld [vmem:[#allocation4 + $0x670] sm:$0xff]
    %v764 = vld [vmem:[#allocation4 + $0x678] sm:$0xff]
    %v765 = vld [vmem:[#allocation4 + $0x680] sm:$0xff]
    %v766 = vld [vmem:[#allocation4 + $0x688] sm:$0xff]
    %v767 = vld [vmem:[#allocation4 + $0x690] sm:$0xff]
    %v768 = vld [vmem:[#allocation4 + $0x698] sm:$0xff]
    %v769 = vld [vmem:[#allocation4 + $0x6a0] sm:$0xff]
    %v770 = vld [vmem:[#allocation4 + $0x6a8] sm:$0xff]
    %v771 = vld [vmem:[#allocation4 + $0x6b0] sm:$0xff]
    %v772 = vld [vmem:[#allocation4 + $0x6b8] sm:$0xff]
    %v773 = vld [vmem:[#allocation4 + $0x6c0] sm:$0xff]
    %v774 = vld [vmem:[#allocation4 + $0x6c8] sm:$0xff]
    %v775 = vld [vmem:[#allocation4 + $0x6d0] sm:$0xff]
    %v776 = vld [vmem:[#allocation4 + $0x6d8] sm:$0xff]
    %v777 = vld [vmem:[#allocation4 + $0x6e0] sm:$0xff]
    %v778 = vld [vmem:[#allocation4 + $0x6e8] sm:$0xff]
    %v779 = vld [vmem:[#allocation4 + $0x6f0] sm:$0xff]
    %v780 = vld [vmem:[#allocation4 + $0x6f8] sm:$0xff]
    %v781 = vld [vmem:[#allocation4 + $0x700] sm:$0xff]
    %v782 = vld [vmem:[#allocation4 + $0x708] sm:$0xff]
    %v783 = vld [vmem:[#allocation4 + $0x710] sm:$0xff]
    %v784 = vld [vmem:[#allocation4 + $0x718] sm:$0xff]
    %v785 = vld [vmem:[#allocation4 + $0x720] sm:$0xff]
    %v786 = vld [vmem:[#allocation4 + $0x728] sm:$0xff]
    %v787 = vld [vmem:[#allocation4 + $0x730] sm:$0xff]
    %v788 = vld [vmem:[#allocation4 + $0x738] sm:$0xff]
    %v789 = vld [vmem:[#allocation4 + $0x740] sm:$0xff]
    %v790 = vld [vmem:[#allocation4 + $0x748] sm:$0xff]
    %v791 = vld [vmem:[#allocation4 + $0x750] sm:$0xff]
    %v792 = vld [vmem:[#allocation4 + $0x758] sm:$0xff]
    %v793 = vld [vmem:[#allocation4 + $0x760] sm:$0xff]
    %v794 = vld [vmem:[#allocation4 + $0x768] sm:$0xff]
    %v795 = vld [vmem:[#allocation4 + $0x770] sm:$0xff]
    %v796 = vld [vmem:[#allocation4 + $0x778] sm:$0xff]
    %v797 = vld [vmem:[#allocation4 + $0x780] sm:$0x7f]
    %v798 = vld [vmem:[#allocation4 + $0x788] sm:$0x7f]
    %v799 = vld [vmem:[#allocation4 + $0x790] sm:$0x7f]
    %v800 = vld [vmem:[#allocation4 + $0x798] sm:$0x7f]
    %v801 = vld [vmem:[#allocation4 + $0x7a0] sm:$0x7f]
    %v802 = vld [vmem:[#allocation4 + $0x7a8] sm:$0x7f]
    %v803 = vld [vmem:[#allocation4 + $0x7b0] sm:$0x7f]
    %v804 = vld [vmem:[#allocation4 + $0x7b8] sm:$0x7f]
    %v807 = vunpack.c.l.s4 1983009808
    %v808 = vunpack.c.0.s8 %v807
    %v809 = vlaneseq
    %v810 = vshrl.u32 %v809, 7
    %v811 = vsub.s32 %v808, %v810
    %v812 = vrot.slane %v556, %v811
    %v813 = vcombine.high %v812, %v812
    %vm815 = vcmask 973824
    %v816 = vsel %vm815, %v813, 0
    %vm818 = vcmask 1046528
    %v820 = vsel %vm818, %v797, 0
    %v823 = vsel %vm818, %v798, 0
    %v826 = vsel %vm818, %v799, 0
    %v829 = vsel %vm818, %v800, 0
    %v832 = vsel %vm818, %v801, 0
    %v835 = vsel %vm818, %v802, 0
    %v838 = vsel %vm818, %v803, 0
    %v841 = vsel %vm818, %v804, 0
    %843 = vmatprep.subr.mxu0 %v558
    %844 = vmatpush1.msra.mxu0 %v557
    %845 = vmatprep.subr.mxu0 %v566
    %846 = vmatpush1.msra.mxu0 %v565
    %847 = vmatprep.subr.mxu0 %v574
    %848 = vmatpush1.msra.mxu0 %v573
    %849 = vmatprep.subr.mxu0 %v582
    %850 = vmatpush1.msra.mxu0 %v581
    %851 = vmatprep.subr.mxu0 %v590
    %852 = vmatpush1.msra.mxu0 %v589
    %853 = vmatprep.subr.mxu0 %v598
    %854 = vmatpush1.msra.mxu0 %v597
    %855 = vmatprep.subr.mxu0 %v606
    %856 = vmatpush1.msra.mxu0 %v605
    %857 = vmatprep.subr.mxu0 %v614
    %858 = vmatpush1.msra.mxu0 %v613
    %859 = vmatprep.subr.mxu0 %v622
    %860 = vmatpush1.msra.mxu0 %v621
    %861 = vmatprep.subr.mxu0 %v630
    %862 = vmatpush1.msra.mxu0 %v629
    %863 = vmatprep.subr.mxu0 %v638
    %864 = vmatpush1.msra.mxu0 %v637
    %865 = vmatprep.subr.mxu0 %v646
    %866 = vmatpush1.msra.mxu0 %v645
    %867 = vmatprep.subr.mxu0 %v654
    %868 = vmatpush1.msra.mxu0 %v653
    %869 = vmatprep.subr.mxu0 %v662
    %870 = vmatpush1.msra.mxu0 %v661
    %871 = vmatprep.subr.mxu0 %v670
    %872 = vmatpush1.msra.mxu0 %v669
    %873 = vmatprep.subr.mxu0 %v678
    %874 = vmatpush1.msra.mxu0 %v677
    %875 = vmatprep.subr.mxu0 %v686
    %876 = vmatpush1.msra.mxu0 %v685
    %877 = vmatprep.subr.mxu0 %v694
    %878 = vmatpush1.msra.mxu0 %v693
    %879 = vmatprep.subr.mxu0 %v702
    %880 = vmatpush1.msra.mxu0 %v701
    %881 = vmatprep.subr.mxu0 %v710
    %882 = vmatpush1.msra.mxu0 %v709
    %883 = vmatprep.subr.mxu0 %v718
    %884 = vmatpush1.msra.mxu0 %v717
    %885 = vmatprep.subr.mxu0 %v726
    %886 = vmatpush1.msra.mxu0 %v725
    %887 = vmatprep.subr.mxu0 %v734
    %888 = vmatpush1.msra.mxu0 %v733
    %889 = vmatprep.subr.mxu0 %v742
    %890 = vmatpush1.msra.mxu0 %v741
    %891 = vmatprep.subr.mxu0 %v750
    %892 = vmatpush1.msra.mxu0 %v749
    %893 = vmatprep.subr.mxu0 %v758
    %894 = vmatpush1.msra.mxu0 %v757
    %895 = vmatprep.subr.mxu0 %v766
    %896 = vmatpush1.msra.mxu0 %v765
    %897 = vmatprep.subr.mxu0 %v774
    %898 = vmatpush1.msra.mxu0 %v773
    %899 = vmatprep.subr.mxu0 %v782
    %900 = vmatpush1.msra.mxu0 %v781
    %901 = vmatprep.subr.mxu0 %v790
    %902 = vmatpush1.msra.mxu0 %v789
    %903 = vmatprep.subr.mxu0 %v823
    %904 = vmatpush1.msra.mxu0 %v820
    %905 = vmatprep.subr.mxu0 0.0
    %906 = vmatpush1.msra.mxu0 0.0
    %907 = vmatprep.mubr.f32.mxu0 %v816
    %908 = vmatmul.mubr.f32.gmra.mrb[0].mxu0 %v812
    %v909 = vpop.f32.mrb[0].mxu0
    %v910 = vadd.f32 0.0, %v909
    %v911 = vpop.f32.mrb[0].mxu0
    %v912 = vadd.f32 0.0, %v911
    %913 = vdwg.mxu0
    %914 = vmatprep.subr.mxu0 %v560
    %915 = vmatpush1.msra.mxu0 %v559
    %916 = vmatprep.subr.mxu0 %v568
    %917 = vmatpush1.msra.mxu0 %v567
    %918 = vmatprep.subr.mxu0 %v576
    %919 = vmatpush1.msra.mxu0 %v575
    %920 = vmatprep.subr.mxu0 %v584
    %921 = vmatpush1.msra.mxu0 %v583
    %922 = vmatprep.subr.mxu0 %v592
    %923 = vmatpush1.msra.mxu0 %v591
    %924 = vmatprep.subr.mxu0 %v600
    %925 = vmatpush1.msra.mxu0 %v599
    %926 = vmatprep.subr.mxu0 %v608
    %927 = vmatpush1.msra.mxu0 %v607
    %928 = vmatprep.subr.mxu0 %v616
    %929 = vmatpush1.msra.mxu0 %v615
    %930 = vmatprep.subr.mxu0 %v624
    %931 = vmatpush1.msra.mxu0 %v623
    %932 = vmatprep.subr.mxu0 %v632
    %933 = vmatpush1.msra.mxu0 %v631
    %934 = vmatprep.subr.mxu0 %v640
    %935 = vmatpush1.msra.mxu0 %v639
    %936 = vmatprep.subr.mxu0 %v648
    %937 = vmatpush1.msra.mxu0 %v647
    %938 = vmatprep.subr.mxu0 %v656
    %939 = vmatpush1.msra.mxu0 %v655
    %940 = vmatprep.subr.mxu0 %v664
    %941 = vmatpush1.msra.mxu0 %v663
    %942 = vmatprep.subr.mxu0 %v672
    %943 = vmatpush1.msra.mxu0 %v671
    %944 = vmatprep.subr.mxu0 %v680
    %945 = vmatpush1.msra.mxu0 %v679
    %946 = vmatprep.subr.mxu0 %v688
    %947 = vmatpush1.msra.mxu0 %v687
    %948 = vmatprep.subr.mxu0 %v696
    %949 = vmatpush1.msra.mxu0 %v695
    %950 = vmatprep.subr.mxu0 %v704
    %951 = vmatpush1.msra.mxu0 %v703
    %952 = vmatprep.subr.mxu0 %v712
    %953 = vmatpush1.msra.mxu0 %v711
    %954 = vmatprep.subr.mxu0 %v720
    %955 = vmatpush1.msra.mxu0 %v719
    %956 = vmatprep.subr.mxu0 %v728
    %957 = vmatpush1.msra.mxu0 %v727
    %958 = vmatprep.subr.mxu0 %v736
    %959 = vmatpush1.msra.mxu0 %v735
    %960 = vmatprep.subr.mxu0 %v744
    %961 = vmatpush1.msra.mxu0 %v743
    %962 = vmatprep.subr.mxu0 %v752
    %963 = vmatpush1.msra.mxu0 %v751
    %964 = vmatprep.subr.mxu0 %v760
    %965 = vmatpush1.msra.mxu0 %v759
    %966 = vmatprep.subr.mxu0 %v768
    %967 = vmatpush1.msra.mxu0 %v767
    %968 = vmatprep.subr.mxu0 %v776
    %969 = vmatpush1.msra.mxu0 %v775
    %970 = vmatprep.subr.mxu0 %v784
    %971 = vmatpush1.msra.mxu0 %v783
    %972 = vmatprep.subr.mxu0 %v792
    %973 = vmatpush1.msra.mxu0 %v791
    %974 = vmatprep.subr.mxu0 %v829
    %975 = vmatpush1.msra.mxu0 %v826
    %976 = vmatprep.subr.mxu0 0.0
    %977 = vmatpush1.msra.mxu0 0.0
    %978 = vmatprep.mubr.f32.mxu0 %v816
    %979 = vmatmul.mubr.f32.gmra.mrb[0].mxu0 %v812
    %v980 = vpop.f32.mrb[0].mxu0
    %v981 = vadd.f32 0.0, %v980
    %v982 = vpop.f32.mrb[0].mxu0
    %v983 = vadd.f32 0.0, %v982
    %984 = vdwg.mxu0
    %985 = vmatprep.subr.mxu0 %v562
    %986 = vmatpush1.msra.mxu0 %v561
    %987 = vmatprep.subr.mxu0 %v570
    %988 = vmatpush1.msra.mxu0 %v569
    %989 = vmatprep.subr.mxu0 %v578
    %990 = vmatpush1.msra.mxu0 %v577
    %991 = vmatprep.subr.mxu0 %v586
    %992 = vmatpush1.msra.mxu0 %v585
    %993 = vmatprep.subr.mxu0 %v594
    %994 = vmatpush1.msra.mxu0 %v593
    %995 = vmatprep.subr.mxu0 %v602
    %996 = vmatpush1.msra.mxu0 %v601
    %997 = vmatprep.subr.mxu0 %v610
    %998 = vmatpush1.msra.mxu0 %v609
    %999 = vmatprep.subr.mxu0 %v618
    %1000 = vmatpush1.msra.mxu0 %v617
    %1001 = vmatprep.subr.mxu0 %v626
    %1002 = vmatpush1.msra.mxu0 %v625
    %1003 = vmatprep.subr.mxu0 %v634
    %1004 = vmatpush1.msra.mxu0 %v633
    %1005 = vmatprep.subr.mxu0 %v642
    %1006 = vmatpush1.msra.mxu0 %v641
    %1007 = vmatprep.subr.mxu0 %v650
    %1008 = vmatpush1.msra.mxu0 %v649
    %1009 = vmatprep.subr.mxu0 %v658
    %1010 = vmatpush1.msra.mxu0 %v657
    %1011 = vmatprep.subr.mxu0 %v666
    %1012 = vmatpush1.msra.mxu0 %v665
    %1013 = vmatprep.subr.mxu0 %v674
    %1014 = vmatpush1.msra.mxu0 %v673
    %1015 = vmatprep.subr.mxu0 %v682
    %1016 = vmatpush1.msra.mxu0 %v681
    %1017 = vmatprep.subr.mxu0 %v690
    %1018 = vmatpush1.msra.mxu0 %v689
    %1019 = vmatprep.subr.mxu0 %v698
    %1020 = vmatpush1.msra.mxu0 %v697
    %1021 = vmatprep.subr.mxu0 %v706
    %1022 = vmatpush1.msra.mxu0 %v705
    %1023 = vmatprep.subr.mxu0 %v714
    %1024 = vmatpush1.msra.mxu0 %v713
    %1025 = vmatprep.subr.mxu0 %v722
    %1026 = vmatpush1.msra.mxu0 %v721
    %1027 = vmatprep.subr.mxu0 %v730
    %1028 = vmatpush1.msra.mxu0 %v729
    %1029 = vmatprep.subr.mxu0 %v738
    %1030 = vmatpush1.msra.mxu0 %v737
    %1031 = vmatprep.subr.mxu0 %v746
    %1032 = vmatpush1.msra.mxu0 %v745
    %1033 = vmatprep.subr.mxu0 %v754
    %1034 = vmatpush1.msra.mxu0 %v753
    %1035 = vmatprep.subr.mxu0 %v762
    %1036 = vmatpush1.msra.mxu0 %v761
    %1037 = vmatprep.subr.mxu0 %v770
    %1038 = vmatpush1.msra.mxu0 %v769
    %1039 = vmatprep.subr.mxu0 %v778
    %1040 = vmatpush1.msra.mxu0 %v777
    %1041 = vmatprep.subr.mxu0 %v786
    %1042 = vmatpush1.msra.mxu0 %v785
    %1043 = vmatprep.subr.mxu0 %v794
    %1044 = vmatpush1.msra.mxu0 %v793
    %1045 = vmatprep.subr.mxu0 %v835
    %1046 = vmatpush1.msra.mxu0 %v832
    %1047 = vmatprep.subr.mxu0 0.0
    %1048 = vmatpush1.msra.mxu0 0.0
    %1049 = vmatprep.mubr.f32.mxu0 %v816
    %1050 = vmatmul.mubr.f32.gmra.mrb[0].mxu0 %v812
    %v1051 = vpop.f32.mrb[0].mxu0
    %v1052 = vadd.f32 0.0, %v1051
    %v1053 = vpop.f32.mrb[0].mxu0
    %v1054 = vadd.f32 0.0, %v1053
    %1055 = vdwg.mxu0
    %1056 = vmatprep.subr.mxu0 %v564
    %1057 = vmatpush1.msra.mxu0 %v563
    %1058 = vmatprep.subr.mxu0 %v572
    %1059 = vmatpush1.msra.mxu0 %v571
    %1060 = vmatprep.subr.mxu0 %v580
    %1061 = vmatpush1.msra.mxu0 %v579
    %1062 = vmatprep.subr.mxu0 %v588
    %1063 = vmatpush1.msra.mxu0 %v587
    %1064 = vmatprep.subr.mxu0 %v596
    %1065 = vmatpush1.msra.mxu0 %v595
    %1066 = vmatprep.subr.mxu0 %v604
    %1067 = vmatpush1.msra.mxu0 %v603
    %1068 = vmatprep.subr.mxu0 %v612
    %1069 = vmatpush1.msra.mxu0 %v611
    %1070 = vmatprep.subr.mxu0 %v620
    %1071 = vmatpush1.msra.mxu0 %v619
    %1072 = vmatprep.subr.mxu0 %v628
    %1073 = vmatpush1.msra.mxu0 %v627
    %1074 = vmatprep.subr.mxu0 %v636
    %1075 = vmatpush1.msra.mxu0 %v635
    %1076 = vmatprep.subr.mxu0 %v644
    %1077 = vmatpush1.msra.mxu0 %v643
    %1078 = vmatprep.subr.mxu0 %v652
    %1079 = vmatpush1.msra.mxu0 %v651
    %1080 = vmatprep.subr.mxu0 %v660
    %1081 = vmatpush1.msra.mxu0 %v659
    %1082 = vmatprep.subr.mxu0 %v668
    %1083 = vmatpush1.msra.mxu0 %v667
    %1084 = vmatprep.subr.mxu0 %v676
    %1085 = vmatpush1.msra.mxu0 %v675
    %1086 = vmatprep.subr.mxu0 %v684
    %1087 = vmatpush1.msra.mxu0 %v683
    %1088 = vmatprep.subr.mxu0 %v692
    %1089 = vmatpush1.msra.mxu0 %v691
    %1090 = vmatprep.subr.mxu0 %v700
    %1091 = vmatpush1.msra.mxu0 %v699
    %1092 = vmatprep.subr.mxu0 %v708
    %1093 = vmatpush1.msra.mxu0 %v707
    %1094 = vmatprep.subr.mxu0 %v716
    %1095 = vmatpush1.msra.mxu0 %v715
    %1096 = vmatprep.subr.mxu0 %v724
    %1097 = vmatpush1.msra.mxu0 %v723
    %1098 = vmatprep.subr.mxu0 %v732
    %1099 = vmatpush1.msra.mxu0 %v731
    %1100 = vmatprep.subr.mxu0 %v740
    %1101 = vmatpush1.msra.mxu0 %v739
    %1102 = vmatprep.subr.mxu0 %v748
    %1103 = vmatpush1.msra.mxu0 %v747
    %1104 = vmatprep.subr.mxu0 %v756
    %1105 = vmatpush1.msra.mxu0 %v755
    %1106 = vmatprep.subr.mxu0 %v764
    %1107 = vmatpush1.msra.mxu0 %v763
    %1108 = vmatprep.subr.mxu0 %v772
    %1109 = vmatpush1.msra.mxu0 %v771
    %1110 = vmatprep.subr.mxu0 %v780
    %1111 = vmatpush1.msra.mxu0 %v779
    %1112 = vmatprep.subr.mxu0 %v788
    %1113 = vmatpush1.msra.mxu0 %v787
    %1114 = vmatprep.subr.mxu0 %v796
    %1115 = vmatpush1.msra.mxu0 %v795
    %1116 = vmatprep.subr.mxu0 %v841
    %1117 = vmatpush1.msra.mxu0 %v838
    %1118 = vmatprep.subr.mxu0 0.0
    %1119 = vmatpush1.msra.mxu0 0.0
    %1120 = vmatprep.mubr.f32.mxu0 %v816
    %1121 = vmatmul.mubr.f32.gmra.mrb[0].mxu0 %v812
    %v1122 = vpop.f32.mrb[0].mxu0
    %v1123 = vadd.f32 0.0, %v1122
    %v1124 = vpop.f32.mrb[0].mxu0
    %v1125 = vadd.f32 0.0, %v1124
    %1126 = vdwg.mxu0
    %v1127 = vsel %vm365, %v910, 0.0
    %v1128 = vrot.slane %v1127, 4
    %v1129 = vadd.f32 %v1127, %v1128
    %v1130 = vrot.slane %v1129, 2
    %v1131 = vadd.f32 %v1129, %v1130
    %v1132 = vrot.slane %v1131, 1
    %v1133 = vadd.f32 %v1131, %v1132
    %v1134 = vsel %vm365, %v912, 0.0
    %v1135 = vrot.slane %v1134, 4
    %v1136 = vadd.f32 %v1134, %v1135
    %v1137 = vrot.slane %v1136, 2
    %v1138 = vadd.f32 %v1136, %v1137
    %v1139 = vrot.slane %v1138, 1
    %v1140 = vadd.f32 %v1138, %v1139
    %v1141 = vsel %vm365, %v981, 0.0
    %v1142 = vrot.slane %v1141, 4
    %v1143 = vadd.f32 %v1141, %v1142
    %v1144 = vrot.slane %v1143, 2
    %v1145 = vadd.f32 %v1143, %v1144
    %v1146 = vrot.slane %v1145, 1
    %v1147 = vadd.f32 %v1145, %v1146
    %v1148 = vsel %vm365, %v983, 0.0
    %v1149 = vrot.slane %v1148, 4
    %v1150 = vadd.f32 %v1148, %v1149
    %v1151 = vrot.slane %v1150, 2
    %v1152 = vadd.f32 %v1150, %v1151
    %v1153 = vrot.slane %v1152, 1
    %v1154 = vadd.f32 %v1152, %v1153
    %v1155 = vsel %vm365, %v1052, 0.0
    %v1156 = vrot.slane %v1155, 4
    %v1157 = vadd.f32 %v1155, %v1156
    %v1158 = vrot.slane %v1157, 2
    %v1159 = vadd.f32 %v1157, %v1158
    %v1160 = vrot.slane %v1159, 1
    %v1161 = vadd.f32 %v1159, %v1160
    %v1162 = vsel %vm365, %v1054, 0.0
    %v1163 = vrot.slane %v1162, 4
    %v1164 = vadd.f32 %v1162, %v1163
    %v1165 = vrot.slane %v1164, 2
    %v1166 = vadd.f32 %v1164, %v1165
    %v1167 = vrot.slane %v1166, 1
    %v1168 = vadd.f32 %v1166, %v1167
    %v1169 = vsel %vm365, %v1123, 0.0
    %v1170 = vrot.slane %v1169, 4
    %v1171 = vadd.f32 %v1169, %v1170
    %v1172 = vrot.slane %v1171, 2
    %v1173 = vadd.f32 %v1171, %v1172
    %v1174 = vrot.slane %v1173, 1
    %v1175 = vadd.f32 %v1173, %v1174
    %v1176 = vsel %vm365, %v1125, 0.0
    %v1177 = vrot.slane %v1176, 4
    %v1178 = vadd.f32 %v1176, %v1177
    %v1179 = vrot.slane %v1178, 2
    %v1180 = vadd.f32 %v1178, %v1179
    %v1181 = vrot.slane %v1180, 1
    %v1182 = vadd.f32 %v1180, %v1181
    %v1183 = vrcp.pop 2.0
    %v1184 = vmul.f32 %v1133, %v1183
    %v1185 = vmul.f32 %v1140, %v1183
    %v1186 = vmul.f32 %v1147, %v1183
    %v1187 = vmul.f32 %v1154, %v1183
    %v1188 = vmul.f32 %v1161, %v1183
    %v1189 = vmul.f32 %v1168, %v1183
    %v1190 = vmul.f32 %v1175, %v1183
    %v1191 = vmul.f32 %v1182, %v1183
    %v1192 = vsub.f32 %v910, %v1184
    %v1193 = vsub.f32 %v912, %v1185
    %v1194 = vsub.f32 %v981, %v1186
    %v1195 = vsub.f32 %v983, %v1187
    %v1196 = vsub.f32 %v1052, %v1188
    %v1197 = vsub.f32 %v1054, %v1189
    %v1198 = vsub.f32 %v1123, %v1190
    %v1199 = vsub.f32 %v1125, %v1191
    %v1200 = vmul.f32 %v1192, %v1192
    %v1201 = vmul.f32 %v1193, %v1193
    %v1202 = vmul.f32 %v1194, %v1194
    %v1203 = vmul.f32 %v1195, %v1195
    %v1204 = vmul.f32 %v1196, %v1196
    %v1205 = vmul.f32 %v1197, %v1197
    %v1206 = vmul.f32 %v1198, %v1198
    %v1207 = vmul.f32 %v1199, %v1199
    %v1208 = vsel %vm365, %v1200, 0.0
    %v1209 = vrot.slane %v1208, 4
    %v1210 = vadd.f32 %v1208, %v1209
    %v1211 = vrot.slane %v1210, 2
    %v1212 = vadd.f32 %v1210, %v1211
    %v1213 = vrot.slane %v1212, 1
    %v1214 = vadd.f32 %v1212, %v1213
    %v1215 = vsel %vm365, %v1201, 0.0
    %v1216 = vrot.slane %v1215, 4
    %v1217 = vadd.f32 %v1215, %v1216
    %v1218 = vrot.slane %v1217, 2
    %v1219 = vadd.f32 %v1217, %v1218
    %v1220 = vrot.slane %v1219, 1
    %v1221 = vadd.f32 %v1219, %v1220
    %v1222 = vsel %vm365, %v1202, 0.0
    %v1223 = vrot.slane %v1222, 4
    %v1224 = vadd.f32 %v1222, %v1223
    %v1225 = vrot.slane %v1224, 2
    %v1226 = vadd.f32 %v1224, %v1225
    %v1227 = vrot.slane %v1226, 1
    %v1228 = vadd.f32 %v1226, %v1227
    %v1229 = vsel %vm365, %v1203, 0.0
    %v1230 = vrot.slane %v1229, 4
    %v1231 = vadd.f32 %v1229, %v1230
    %v1232 = vrot.slane %v1231, 2
    %v1233 = vadd.f32 %v1231, %v1232
    %v1234 = vrot.slane %v1233, 1
    %v1235 = vadd.f32 %v1233, %v1234
    %v1236 = vsel %vm365, %v1204, 0.0
    %v1237 = vrot.slane %v1236, 4
    %v1238 = vadd.f32 %v1236, %v1237
    %v1239 = vrot.slane %v1238, 2
    %v1240 = vadd.f32 %v1238, %v1239
    %v1241 = vrot.slane %v1240, 1
    %v1242 = vadd.f32 %v1240, %v1241
    %v1243 = vsel %vm365, %v1205, 0.0
    %v1244 = vrot.slane %v1243, 4
    %v1245 = vadd.f32 %v1243, %v1244
    %v1246 = vrot.slane %v1245, 2
    %v1247 = vadd.f32 %v1245, %v1246
    %v1248 = vrot.slane %v1247, 1
    %v1249 = vadd.f32 %v1247, %v1248
    %v1250 = vsel %vm365, %v1206, 0.0
    %v1251 = vrot.slane %v1250, 4
    %v1252 = vadd.f32 %v1250, %v1251
    %v1253 = vrot.slane %v1252, 2
    %v1254 = vadd.f32 %v1252, %v1253
    %v1255 = vrot.slane %v1254, 1
    %v1256 = vadd.f32 %v1254, %v1255
    %v1257 = vsel %vm365, %v1207, 0.0
    %v1258 = vrot.slane %v1257, 4
    %v1259 = vadd.f32 %v1257, %v1258
    %v1260 = vrot.slane %v1259, 2
    %v1261 = vadd.f32 %v1259, %v1260
    %v1262 = vrot.slane %v1261, 1
    %v1263 = vadd.f32 %v1261, %v1262
    %v1264 = vmul.f32 %v1214, %v1183
    %v1265 = vmul.f32 %v1221, %v1183
    %v1266 = vmul.f32 %v1228, %v1183
    %v1267 = vmul.f32 %v1235, %v1183
    %v1268 = vmul.f32 %v1242, %v1183
    %v1269 = vmul.f32 %v1249, %v1183
    %v1270 = vmul.f32 %v1256, %v1183
    %v1271 = vmul.f32 %v1263, %v1183
    %v1272 = vadd.f32 %v1264, 1e-05
    %v1273 = vadd.f32 %v1265, 1e-05
    %v1274 = vadd.f32 %v1266, 1e-05
    %v1275 = vadd.f32 %v1267, 1e-05
    %v1276 = vadd.f32 %v1268, 1e-05
    %v1277 = vadd.f32 %v1269, 1e-05
    %v1278 = vadd.f32 %v1270, 1e-05
    %v1279 = vadd.f32 %v1271, 1e-05
    %v1280 = vrsqrt.pop %v1272
    %v1281 = vrsqrt.pop %v1273
    %v1282 = vrsqrt.pop %v1274
    %v1283 = vrsqrt.pop %v1275
    %v1284 = vrsqrt.pop %v1276
    %v1285 = vrsqrt.pop %v1277
    %v1286 = vrsqrt.pop %v1278
    %v1287 = vrsqrt.pop %v1279
    %v1288 = vmul.f32 %v1192, %v1280
    %v1289 = vmul.f32 %v1193, %v1281
    %v1290 = vmul.f32 %v1194, %v1282
    %v1291 = vmul.f32 %v1195, %v1283
    %v1292 = vmul.f32 %v1196, %v1284
    %v1293 = vmul.f32 %v1197, %v1285
    %v1294 = vmul.f32 %v1198, %v1286
    %v1295 = vmul.f32 %v1199, %v1287
    %v1296 = vmul.f32 %v1288, 0.2
    %v1297 = vmul.f32 %v1289, 0.2
    %v1298 = vmul.f32 %v1290, 0.2
    %v1299 = vmul.f32 %v1291, 0.2
    %v1300 = vmul.f32 %v1292, 0.2
    %v1301 = vmul.f32 %v1293, 0.2
    %v1302 = vmul.f32 %v1294, 0.2
    %v1303 = vmul.f32 %v1295, 0.2
    %v1304 = vmax.f32 %v1288, %v1296
    %v1305 = vmax.f32 %v1289, %v1297
    %v1306 = vmax.f32 %v1290, %v1298
    %v1307 = vmax.f32 %v1291, %v1299
    %v1308 = vmax.f32 %v1292, %v1300
    %v1309 = vmax.f32 %v1293, %v1301
    %v1310 = vmax.f32 %v1294, %v1302
    %v1311 = vmax.f32 %v1295, %v1303
    %v1312 = vld [vmem:[%s4] sm:$0xff]
    %v1314 = vlaneseq
    %v1315 = vshrl.u32 %v1314, 7
    %v1316 = vsub.s32 0, %v1315
    %v1317 = vrot.slane %v1312, %v1316
    %v1318 = vlaneseq
    %v1319 = vshrl.u32 %v1318, 7
    %v1320 = vsub.s32 1, %v1319
    %v1321 = vrot.slane %v1312, %v1320
    %v1322 = vlaneseq
    %v1323 = vshrl.u32 %v1322, 7
    %v1324 = vsub.s32 2, %v1323
    %v1325 = vrot.slane %v1312, %v1324
    %v1326 = vlaneseq
    %v1327 = vshrl.u32 %v1326, 7
    %v1328 = vsub.s32 3, %v1327
    %v1329 = vrot.slane %v1312, %v1328
    %v1330 = vlaneseq
    %v1331 = vshrl.u32 %v1330, 7
    %v1332 = vsub.s32 4, %v1331
    %v1333 = vrot.slane %v1312, %v1332
    %v1334 = vlaneseq
    %v1335 = vshrl.u32 %v1334, 7
    %v1336 = vsub.s32 5, %v1335
    %v1337 = vrot.slane %v1312, %v1336
    %v1338 = vlaneseq
    %v1339 = vshrl.u32 %v1338, 7
    %v1340 = vsub.s32 6, %v1339
    %v1341 = vrot.slane %v1312, %v1340
    %v1342 = vlaneseq
    %v1343 = vshrl.u32 %v1342, 7
    %v1344 = vsub.s32 7, %v1343
    %v1345 = vrot.slane %v1312, %v1344
    %v1354 = vmul.f32 %v1304, %v1317
    %v1355 = vmul.f32 %v1305, %v1321
    %v1356 = vmul.f32 %v1306, %v1325
    %v1357 = vmul.f32 %v1307, %v1329
    %v1358 = vmul.f32 %v1308, %v1333
    %v1359 = vmul.f32 %v1309, %v1337
    %v1360 = vmul.f32 %v1310, %v1341
    %v1361 = vmul.f32 %v1311, %v1345
    %v1362 = vsel %vm365, %v1354, 0.0
    %v1363 = vsel %vm365, %v1355, 0.0
    %v1364 = vadd.f32 %v1362, %v1363
    %v1365 = vsel %vm365, %v1356, 0.0
    %v1366 = vadd.f32 %v1364, %v1365
    %v1367 = vsel %vm365, %v1357, 0.0
    %v1368 = vadd.f32 %v1366, %v1367
    %v1369 = vsel %vm365, %v1358, 0.0
    %v1370 = vadd.f32 %v1368, %v1369
    %v1371 = vsel %vm365, %v1359, 0.0
    %v1372 = vadd.f32 %v1370, %v1371
    %v1373 = vsel %vm365, %v1360, 0.0
    %v1374 = vadd.f32 %v1372, %v1373
    %v1375 = vsel %vm365, %v1361, 0.0
    %v1376 = vadd.f32 %v1374, %v1375
    %1377 = vadd.xlane.f32.xlu0 %v1376
    %v1378 = vpop.xlane.xlu0 %1377
    %v1379 = vld [vmem:[%s4 + $0x8] sm:$0x1]
    %v1381 = vlaneseq
    %v1382 = vshrl.u32 %v1381, 7
    %v1383 = vsub.s32 0, %v1382
    %v1384 = vrot.slane %v1379, %v1383
    %v1386 = vmul.f32 %v34, %v1384
    %vm1387 = vcmask 123904
    %v1388 = vsel %vm1387, %v1386, 0.0
    %1389 = vadd.xlane.f32.xlu0 %v1388
    %v1390 = vpop.xlane.xlu0 %1389
    %v1391 = vadd.f32 %v1378, %v1390
    %1392 = vst.msk [vmem:[%s5] sm:$0x3] %vm248, 0.0
    %vm1393 = vcmask 919424
    %1394 = vst.msk [vmem:[%s5] sm:$0x3] %vm1393, %v1391
    %v1395 = vxor.u32 %v1391, 2147483648
    %v1396 = vmul.f32 %v1395, 1.442695
    %v1397 = vpow.pop %v1396
    %v1398 = vadd.f32 %v1397, 1.0
    %v1399 = vrcp.pop %v1398
    %v1400 = vmul.f32 1.0, %v1399
    %vm1401 = vcmask 927624
    %1402 = vst.msk [vmem:[%s5] sm:$0x3] %vm1401, %v1400
    // Predicated region
    $region26: #{forward.1} parent=1 // pred_check
      _
    $region27: #{forward.1} parent=1 // pred_check_branch
      %1404 = sbr.rel (0) target = $region29
    $region28: #{forward.1} parent=1 // pred_region
      _
    $region29: #{forward.1} parent=1 // pred_fallthru
      _
    // Predicated region
    $region30: #{forward.1} parent=1 // pred_check
      _
    $region31: #{forward.1} parent=1 // pred_check_branch
      %1406 = sbr.rel (0) target = $region33
    $region32: #{forward.1} parent=1 // pred_region
      _
    $region33: #{forward.1} parent=1 // pred_fallthru
      _
    %1407 = vsyncpa [#allocation5], 1

</llo_original>
